<compile_context>
chip_gen: v5e
topology: v5e:2x2
jax: 0.10.0
libtpu: 0.0.40
codegen_flags: <defaults>
</compile_context>

<pallas_src>
import functools

import jax
import jax.numpy as jnp
from jax import lax
from jax.experimental import pallas as pl
from jax.experimental.pallas import tpu as pltpu


_SQRT_HALF = 0.7071067811865476


def _ata_kernel(x_ref, wf_ref, bf_ref, w2_ref, b2_ref, o_ref, *,
                dim, sub_t, n_sub, use_bf16_matmul, approximate_gelu):
    """One (1, c, hw_block) spatial block, walked in n_sub lane-dense sub-tiles.

    x_ref  : (1, dim, hw_block)    input block (channels on sublanes, space on lanes)
    wf_ref : (dim + hidden, dim)   fused [Wa ; W1] weights (PyTorch (out, in) layout)
    bf_ref : (dim + hidden, sub_t) fused [ba ; b1] biases, pre-broadcast along lanes
    w2_ref : (dim, hidden)         W2
    b2_ref : (dim, sub_t)          b2, pre-broadcast along lanes
    o_ref  : (1, dim, hw_block)    softmax(Wa x + ba) * (W2 gelu(W1 x + b1) + b2)
    """
    mm_dtype = jnp.bfloat16 if use_bf16_matmul else jnp.float32
    wf = wf_ref[...].astype(mm_dtype)
    w2 = w2_ref[...].astype(mm_dtype)
    bf = bf_ref[...]
    b2 = b2_ref[...]

    # Static offsets -> static ref slices (free); n_sub is small (<= 4), each
    # sub-tile's intermediates die at its store so register pressure stays bounded.
    for s in range(n_sub):
        off = s * sub_t
        x = x_ref[0, :, off:off + sub_t].astype(mm_dtype)                 # (dim, sub_t)

        # Fused matmul: one MXU pass over x feeds both the attention and ff branch.
        hc = jnp.dot(wf, x, preferred_element_type=jnp.float32) + bf      # (dim+hidden, sub_t)
        logits = hc[:dim, :]                                              # attention branch
        h1 = hc[dim:, :]                                                  # ff branch

        if approximate_gelu:
            # tanh GELU -> EUP slot (numerics differ slightly from nn.GELU() default).
            h1 = jax.nn.gelu(h1, approximate=True)
        else:
            # Exact erf GELU, matching nn.GELU() default.
            h1 = 0.5 * h1 * (1.0 + lax.erf(h1 * jnp.float32(_SQRT_HALF)))

        ff = jnp.dot(w2, h1.astype(mm_dtype),
                     preferred_element_type=jnp.float32) + b2             # (dim, sub_t)

        # Softmax over the feature (sublane) axis.
        m = jnp.max(logits, axis=0, keepdims=True)
        e = jnp.exp(logits - m)
        ssum = jnp.sum(e, axis=0, keepdims=True)
        # EUP reciprocal + one Newton step: divide stays off the VALU path, ~f32 accuracy.
        r = pl.reciprocal(ssum, approx=True)
        r = r * (2.0 - ssum * r)
        attn = e * r

        o_ref[0, :, off:off + sub_t] = (attn * ff).astype(o_ref.dtype)


def _largest_block(hw_pad, sub_t, max_block, min_steps):
    """Largest multiple-of-sub_t divisor of hw_pad <= max_block with >= min_steps grid steps."""
    best = sub_t
    cand = sub_t
    limit = min(max_block, hw_pad)
    while cand <= limit:
        if hw_pad % cand == 0 and hw_pad // cand >= min_steps:
            best = cand
        cand += sub_t
    return best


def augmented_transformation_attention(x, params, *, use_bf16_matmul=False,
                                       approximate_gelu=False, max_hw_block=1024):
    """x: (b, c, h, w); params: PyTorch-layout (out, in) weights. Returns (b, c, h, w)."""
    b, c, h, w = x.shape
    dim = c
    hidden = params["w1"].shape[0]
    out_dim = params["w2"].shape[0]
    assert params["w1"].shape[1] == dim
    assert out_dim == dim, "out_dim must equal dim so output maps back to NCHW"
    assert dim % 8 == 0, "feature dim must be a multiple of 8 (sublane width)"

    hw = h * w
    hw_pad = int(pl.cdiv(hw, 128)) * 128
    # Keep the per-sub-tile f32 intermediate set within the 64-vreg file (<= 256 lanes).
    sub_t = 256 if hw_pad % 256 == 0 else 128
    # v7x has 2 TensorCores per chip: guarantee >= 2 parallel grid steps when b == 1.
    min_steps = 2 if b == 1 else 1
    hw_block = _largest_block(hw_pad, sub_t, max_hw_block, min_steps)
    n_blocks = hw_pad // hw_block
    n_sub = hw_block // sub_t

    xf = x.reshape(b, c, hw)                                  # free reshape, no transpose
    if hw_pad != hw:
        xf = jnp.pad(xf, ((0, 0), (0, 0), (0, hw_pad - hw)))

    # Fuse the attention projection with the first ff layer: [Wa ; W1], [ba ; b1].
    w_dtype = jnp.bfloat16 if use_bf16_matmul else jnp.float32
    wf = jnp.concatenate([params["wa"], params["w1"]], axis=0).astype(w_dtype)   # (dim+hidden, dim)
    w2 = params["w2"].astype(w_dtype)                                            # (dim, hidden)
    # Pre-broadcast biases along the lane axis (trace-time): pure elementwise add in-kernel.
    bf = jnp.broadcast_to(
        jnp.concatenate([params["ba"], params["b1"]], axis=0),
        (dim + hidden, sub_t)).astype(jnp.float32)
    b2 = jnp.broadcast_to(params["b2"], (out_dim, sub_t)).astype(jnp.float32)

    whole = lambda bi, ti: (0, 0)

    # Actual VMEM need with lane/sublane padding; small headroom; never above 32 MiB
    # (v7x physical VMEM is 64 MiB / 32 MiB default scoped per TensorCore).
    def _padded(rows, cols, isz):
        return ((rows + 7) // 8 * 8) * ((cols + 127) // 128 * 128) * isz
    x_isz = jnp.dtype(x.dtype).itemsize
    w_isz = jnp.dtype(w_dtype).itemsize
    vmem_need = (
        2 * 2 * _padded(c, hw_block, x_isz)              # x + out blocks, double-buffered
        + 2 * _padded(dim + hidden, dim, w_isz)          # wf (Pallas double-buffers constants)
        + 2 * _padded(dim + hidden, sub_t, 4)            # bf
        + 2 * _padded(out_dim, hidden, w_isz)            # w2
        + 2 * _padded(out_dim, sub_t, 4)                 # b2
        + 4 * _padded(dim + hidden, sub_t, 4))           # spill / internal-scratch headroom
    vmem_limit = int(min(max(2 * vmem_need, 4 << 20), 32 << 20))

    kernel = functools.partial(
        _ata_kernel, dim=dim, sub_t=sub_t, n_sub=n_sub,
        use_bf16_matmul=use_bf16_matmul, approximate_gelu=approximate_gelu)

    out = pl.pallas_call(
        kernel,
        out_shape=jax.ShapeDtypeStruct((b, c, hw_pad), x.dtype),
        grid_spec=pltpu.PrefetchScalarGridSpec(
            num_scalar_prefetch=0,
            grid=(b, n_blocks),
            in_specs=[
                pl.BlockSpec((1, c, hw_block), lambda bi, ti: (bi, 0, ti)),   # x block
                pl.BlockSpec((dim + hidden, dim), whole),                     # [Wa;W1]
                pl.BlockSpec((dim + hidden, sub_t), whole),                   # [ba;b1] (lane-broadcast)
                pl.BlockSpec((out_dim, hidden), whole),                       # W2
                pl.BlockSpec((out_dim, sub_t), whole),                        # b2 (lane-broadcast)
            ],
            out_specs=pl.BlockSpec((1, c, hw_block), lambda bi, ti: (bi, 0, ti)),
        ),
        compiler_params=pltpu.CompilerParams(
            dimension_semantics=("parallel", "parallel"),
            vmem_limit_bytes=vmem_limit),
    )(xf, wf, bf, w2, b2)

    if hw_pad != hw:
        out = out[:, :, :hw]
    return out.reshape(b, c, h, w)


def init_params(key, dim, hidden_dim=None, out_dim=None):
    """Deterministic init mimicking torch.nn.Linear (uniform +-1/sqrt(fan_in)).

    Weights use the PyTorch (out_features, in_features) layout; biases are (out, 1).
    """
    hidden_dim = hidden_dim or dim
    out_dim = out_dim or dim
    ks = jax.random.split(key, 6)
    u = lambda k, shape, fan_in: jax.random.uniform(
        k, shape, jnp.float32, -1.0 / (fan_in ** 0.5), 1.0 / (fan_in ** 0.5))
    return {
        "w1": u(ks[0], (hidden_dim, dim), dim),
        "b1": u(ks[1], (hidden_dim, 1), dim),
        "w2": u(ks[2], (out_dim, hidden_dim), hidden_dim),
        "b2": u(ks[3], (out_dim, 1), hidden_dim),
        "wa": u(ks[4], (dim, dim), dim),
        "ba": u(ks[5], (dim, 1), dim),
    }


def _reference(x, params):
    """Pure-JAX reference of the PyTorch forward (dropout p=0)."""
    b, c, h, w = x.shape
    t = jnp.transpose(x.reshape(b, c, h * w), (0, 2, 1))               # (b, hw, c)
    h1 = t @ params["w1"].T + params["b1"][:, 0]
    h1 = jax.nn.gelu(h1, approximate=False)
    ff = h1 @ params["w2"].T + params["b2"][:, 0]
    attn = jax.nn.softmax(t @ params["wa"].T + params["ba"][:, 0], axis=-1)
    out = attn * ff
    return jnp.transpose(out, (0, 2, 1)).reshape(b, c, h, w)


if __name__ == "__main__":
    key = jax.random.PRNGKey(0)
    kx, kp = jax.random.split(key)

    # Matches the encoder's usage: AugmentedTransformationAttention(32, hidden_dim=128)
    # on the 1/8-resolution 32-channel feature map.
    b, c, h, w = 2, 32, 16, 16
    x = jax.random.normal(kx, (b, c, h, w), dtype=jnp.float32)
    params = init_params(kp, dim=c, hidden_dim=128)

    ref = _reference(x, params)

    # Default path: exact nn.GELU() / f32 Linear semantics.
    out = jax.block_until_ready(augmented_transformation_attention(x, params))
    assert out.shape == (b, c, h, w)
    assert jnp.allclose(out, ref, atol=1e-4, rtol=1e-4), "exact-path mismatch vs reference"

    # Optional fast path (bf16 MXU operands + tanh GELU): numerics-changing, looser tolerance.
    out_fast = jax.block_until_ready(
        augmented_transformation_attention(x, params,
                                           use_bf16_matmul=True, approximate_gelu=True))
    assert jnp.allclose(out_fast, ref, atol=5e-2, rtol=5e-2), "fast-path mismatch vs reference"

    print("KERNEL_OK")
</pallas_src>

<mosaic_0001>
module attributes {stable_mosaic.version = 11 : i64} {
  func.func @_ata_kernel(%arg0: i32, %arg1: i32, %arg2: memref<1x32x256xf32, #tpu.memory_space<vmem>>, %arg3: memref<160x32xf32, #tpu.memory_space<vmem>>, %arg4: memref<160x256xf32, #tpu.memory_space<vmem>>, %arg5: memref<32x128xf32, #tpu.memory_space<vmem>>, %arg6: memref<32x256xf32, #tpu.memory_space<vmem>>, %arg7: memref<1x32x256xf32, #tpu.memory_space<vmem>>) attributes {dimension_semantics = [#tpu.dimension_semantics<parallel>, #tpu.dimension_semantics<parallel>], iteration_bounds = array<i64: 2, 1>, scalar_prefetch = 0 : i64, scratch_operands = 0 : i64, tpu.core_type = #tpu.core_type<tc>, window_params = [{transform_indices = @transform_0, window_bounds = array<i64: 1, 32, 256>}, {pipeline_mode = #tpu.pipeline_mode<synchronous>, transform_indices = @transform_1, window_bounds = array<i64: 160, 32>}, {pipeline_mode = #tpu.pipeline_mode<synchronous>, transform_indices = @transform_2, window_bounds = array<i64: 160, 256>}, {pipeline_mode = #tpu.pipeline_mode<synchronous>, transform_indices = @transform_3, window_bounds = array<i64: 32, 128>}, {pipeline_mode = #tpu.pipeline_mode<synchronous>, transform_indices = @transform_4, window_bounds = array<i64: 32, 256>}, {transform_indices = @transform_5, window_bounds = array<i64: 1, 32, 256>}]} {
    %c0 = arith.constant 0 : index
    %c0_0 = arith.constant 0 : index
    %0 = vector.load %arg3[%c0, %c0_0] : memref<160x32xf32, #tpu.memory_space<vmem>>, vector<160x32xf32>
    %c0_1 = arith.constant 0 : index
    %c0_2 = arith.constant 0 : index
    %1 = vector.load %arg5[%c0_1, %c0_2] : memref<32x128xf32, #tpu.memory_space<vmem>>, vector<32x128xf32>
    %c0_3 = arith.constant 0 : index
    %c0_4 = arith.constant 0 : index
    %2 = vector.load %arg4[%c0_3, %c0_4] : memref<160x256xf32, #tpu.memory_space<vmem>>, vector<160x256xf32>
    %c0_5 = arith.constant 0 : index
    %c0_6 = arith.constant 0 : index
    %3 = vector.load %arg6[%c0_5, %c0_6] : memref<32x256xf32, #tpu.memory_space<vmem>>, vector<32x256xf32>
    %c0_7 = arith.constant 0 : index
    %c0_8 = arith.constant 0 : index
    %c0_9 = arith.constant 0 : index
    %4 = vector.load %arg2[%c0_7, %c0_8, %c0_9] : memref<1x32x256xf32, #tpu.memory_space<vmem>>, vector<1x32x256xf32>
    %5 = vector.shape_cast %4 : vector<1x32x256xf32> to vector<32x256xf32>
    %cst = arith.constant dense<0.000000e+00> : vector<160x256xf32>
    %6 = tpu.matmul %0, %5, %cst {dimension_numbers = #tpu.dot_dimension_numbers<[1], [0], [0], [1], [0, 0, 1, 1], [], []>} : vector<160x32xf32>, vector<32x256xf32>, vector<160x256xf32> -> vector<160x256xf32>
    %7 = arith.addf %6, %2 : vector<160x256xf32>
    %8 = vector.extract_strided_slice %7 {offsets = [0, 0], sizes = [32, 256], strides = [1, 1]} : vector<160x256xf32> to vector<32x256xf32>
    %9 = vector.extract_strided_slice %7 {offsets = [32, 0], sizes = [128, 256], strides = [1, 1]} : vector<160x256xf32> to vector<128x256xf32>
    %cst_10 = arith.constant 5.000000e-01 : f32
    %10 = vector.broadcast %cst_10 : f32 to vector<128x256xf32>
    %11 = arith.mulf %10, %9 : vector<128x256xf32>
    %cst_11 = arith.constant 0.707106769 : f32
    %12 = vector.broadcast %cst_11 : f32 to vector<128x256xf32>
    %13 = arith.mulf %9, %12 : vector<128x256xf32>
    %14 = math.erf %13 : vector<128x256xf32>
    %cst_12 = arith.constant 1.000000e+00 : f32
    %15 = vector.broadcast %cst_12 : f32 to vector<128x256xf32>
    %16 = arith.addf %15, %14 : vector<128x256xf32>
    %17 = arith.mulf %11, %16 : vector<128x256xf32>
    %cst_13 = arith.constant dense<0.000000e+00> : vector<32x256xf32>
    %18 = tpu.matmul %1, %17, %cst_13 {dimension_numbers = #tpu.dot_dimension_numbers<[1], [0], [0], [1], [0, 0, 1, 1], [], []>} : vector<32x128xf32>, vector<128x256xf32>, vector<32x256xf32> -> vector<32x256xf32>
    %19 = arith.addf %18, %3 : vector<32x256xf32>
    %cst_14 = arith.constant dense<0xFF800000> : vector<256xf32>
    %20 = vector.multi_reduction <maximumf>, %8, %cst_14 [0] : vector<32x256xf32> to vector<256xf32>
    %21 = vector.shape_cast %20 : vector<256xf32> to vector<1x256xf32>
    %22 = vector.broadcast %21 : vector<1x256xf32> to vector<32x256xf32>
    %23 = arith.subf %8, %22 : vector<32x256xf32>
    %24 = math.exp %23 : vector<32x256xf32>
    %cst_15 = arith.constant dense<0.000000e+00> : vector<256xf32>
    %25 = vector.multi_reduction <add>, %24, %cst_15 [0] : vector<32x256xf32> to vector<256xf32>
    %26 = vector.shape_cast %25 : vector<256xf32> to vector<1x256xf32>
    %27 = tpu.reciprocal %26 {approx = true} : vector<1x256xf32> -> vector<1x256xf32>
    %28 = arith.mulf %26, %27 : vector<1x256xf32>
    %cst_16 = arith.constant 2.000000e+00 : f32
    %29 = vector.broadcast %cst_16 : f32 to vector<1x256xf32>
    %30 = arith.subf %29, %28 : vector<1x256xf32>
    %31 = arith.mulf %27, %30 : vector<1x256xf32>
    %32 = vector.broadcast %31 : vector<1x256xf32> to vector<32x256xf32>
    %33 = arith.mulf %24, %32 : vector<32x256xf32>
    %34 = arith.mulf %33, %19 : vector<32x256xf32>
    %c0_17 = arith.constant 0 : index
    %c0_18 = arith.constant 0 : index
    %c0_19 = arith.constant 0 : index
    %35 = vector.load %arg7[%c0_17, %c0_18, %c0_19] : memref<1x32x256xf32, #tpu.memory_space<vmem>>, vector<1x32x256xf32>
    %36 = vector.shape_cast %35 : vector<1x32x256xf32> to vector<32x256xf32>
    %37 = vector.shape_cast %34 : vector<32x256xf32> to vector<1x32x256xf32>
    tpu.vector_store %arg7[%c0_17, %c0_18, %c0_19], %37 {strides = array<i32>} : memref<1x32x256xf32, #tpu.memory_space<vmem>>, vector<1x32x256xf32>,
    return
  }
  func.func @transform_0(%arg0: i32, %arg1: i32) -> (i32, i32, i32) {
    %c0_i32 = arith.constant 0 : i32
    %c0_i32_0 = arith.constant 0 : i32
    return %arg0, %c0_i32, %arg1 : i32, i32, i32
  }
  func.func @transform_1(%arg0: i32, %arg1: i32) -> (i32, i32) {
    %c0_i32 = arith.constant 0 : i32
    %c0_i32_0 = arith.constant 0 : i32
    %c0_i32_1 = arith.constant 0 : i32
    return %c0_i32, %c0_i32_0 : i32, i32
  }
  func.func @transform_2(%arg0: i32, %arg1: i32) -> (i32, i32) {
    %c0_i32 = arith.constant 0 : i32
    %c0_i32_0 = arith.constant 0 : i32
    %c0_i32_1 = arith.constant 0 : i32
    return %c0_i32, %c0_i32_0 : i32, i32
  }
  func.func @transform_3(%arg0: i32, %arg1: i32) -> (i32, i32) {
    %c0_i32 = arith.constant 0 : i32
    %c0_i32_0 = arith.constant 0 : i32
    %c0_i32_1 = arith.constant 0 : i32
    return %c0_i32, %c0_i32_0 : i32, i32
  }
  func.func @transform_4(%arg0: i32, %arg1: i32) -> (i32, i32) {
    %c0_i32 = arith.constant 0 : i32
    %c0_i32_0 = arith.constant 0 : i32
    %c0_i32_1 = arith.constant 0 : i32
    return %c0_i32, %c0_i32_0 : i32, i32
  }
  func.func @transform_5(%arg0: i32, %arg1: i32) -> (i32, i32, i32) {
    %c0_i32 = arith.constant 0 : i32
    %c0_i32_0 = arith.constant 0 : i32
    return %arg0, %c0_i32, %arg1 : i32, i32, i32
  }
}

</mosaic_0001>

<llo_original>
// kernel: tpu_custom_call.1
$region0: #{tpu_custom_call.1}
  #allocation0 [shape = 'u32[]', space=smem, size = 0x4, offset = 0x4, fixed_abs, tag = 'smem constant byte address 0x4 - core index']
  #allocation1 [shape = 'u32[72,128]{1,0:T(1,128)}', space=vmem, size = 0x9000, scoped, tag = 'internal scratch']
  %s0 = inlined_call_operand.vmem [shape: f32[2,32,256], index: 0, kind: input, shape index: {}]
  %s1 = inlined_call_operand.vmem [shape: f32[160,32], index: 1, kind: input, shape index: {}]
  %s2 = inlined_call_operand.hbm [shape: f32[160,256], index: 2, kind: input, shape index: {}]
  %s3 = inlined_call_operand.vmem [shape: f32[32,128], index: 3, kind: input, shape index: {}]
  %s4 = inlined_call_operand.vmem [shape: f32[32,256], index: 4, kind: input, shape index: {}]
  %s5 = inlined_call_operand.hbm [shape: f32[2,32,256], index: 5, kind: output, shape index: {}]
  %s6 = sld [smem:[#allocation0]]
  $region57: #{tpu_custom_call.1} parent=0
    _
  %s8 = ssub.s32 1, %s6
  %s9 = scalar_select 0, %s8, %s6
  $region1: #{tpu_custom_call.1} parent=0
    #allocation2 [shape = 'u8[163840]{0}', space=vmem, size = 0x28000, scoped, tag = 'input window, operand 2, single buffered']
    #allocation3 [shape = 's32[2]{0}', space=sflag, size = 0x8, scoped, tag = 'scoped memory for tpu_custom_call.1']
    #allocation4 [shape = 's32[2]{0}', space=sflag, size = 0x8, scoped, tag = 'scoped memory for tpu_custom_call.1']
    #allocation5 [shape = 'u8[65536]{0}', space=vmem, size = 0x10000, scoped, tag = 'output window, operand 0']
    %10 = vsyncpa [#allocation3], 0
    %11 = vsyncpa [#allocation4], 0
    %s12 = scalar_lea.sflag [#allocation4], 1
    %13 = vsyncpa %s12, 0
    loop: start=0, step=1, limit=4
    $region2: #{tpu_custom_call.1} parent=1 // loop_pre_header
      _
    $region3: #{tpu_custom_call.1} parent=1 // loop_header
      %s15 = sphi 0, %s19
      %p16 = scmp.ge.s32.totalorder %s15, 4
      %s22 = sphi 0, %s34
      %s23 = sphi 0, %s30
      %s24 = sphi 0, %s22
      %s25 = sphi 0, %s23
      %s26 = sphi 0, %s24
      %s27 = sphi 0, %s25
      %s39 = sphi 0, %s41
      %s42 = sphi 0, %s39
      %s43 = sphi 0, %s42
      %s59 = sphi 0, %s43
      %s63 = sphi 0, %s63
      %s65 = sphi 0, %s63
      %s66 = sphi 0, %s65
      %s80 = sphi 0, %s66
      %s84 = sphi 0, %s84
      %s86 = sphi 0, %s84
      %s87 = sphi 0, %s86
      %s101 = sphi 0, %s87
      %s105 = sphi 0, %s105
      %s107 = sphi 0, %s105
      %s108 = sphi 0, %s107
      %s122 = sphi 0, %s108
      %s126 = sphi 0, %s126
      %s128 = sphi 0, %s126
      %s129 = sphi 0, %s128
      %s143 = sphi 0, %s129
      %s151 = sphi 0, %s153
      %s154 = sphi 0, %s151
      %s155 = sphi 0, %s154
      %s171 = sphi 0, %s155
    $region4: #{tpu_custom_call.1} parent=1 // loop_header_branch
      %18 = sbr.rel (%p16) target = $region8
    $region5: #{tpu_custom_call.1} parent=1 // loop_body
      %s20 = ssub.s32 %s15, 1
      %s21 = ssub.s32 %s15, 2
      %s28 = sadd.s32 1, %s23
      %p29 = scmp.ge.s32.totalorder %s28, 1
      %s30 = scalar_select %p29, 0, %s28
      %s31 = sadd.s32 1, %s22
      %s32 = scalar_select %p29, %s31, %s22
      %p33 = scmp.ge.s32.totalorder %s32, 2
      %s34 = scalar_select %p33, 0, %s32
      %s35 = ssub.s32 %s22, %s34
      %s36 = ssub.s32 %s23, %s30
      %s37 = sor.u32 %s35, %s36
      %p38 = scmp.eq.s32.totalorder %s37, 0
      %s40 = sadd.s32 %s39, 1
      %s41 = scalar_select %p38, %s39, %s40
      %p44 = pneg %p38
      %p45 = scmp.eq.s32.totalorder %s15, 1
      %p46 = por %p44, %p45
      %p47 = scmp.ne.s32.totalorder %s39, %s42
      %p48 = scmp.eq.s32.totalorder %s15, 0
      %p49 = por %p47, %p48
      %p50 = scmp.ne.s32.totalorder %s39, %s42
      %p51 = scmp.eq.s32.totalorder %s20, 1
      %p52 = por %p50, %p51
      %p53 = scmp.ne.s32.totalorder %s42, %s43
      %p54 = scmp.eq.s32.totalorder %s20, 0
      %p55 = por %p53, %p54
      %p56 = scmp.ne.s32.totalorder %s42, %s43
      %p57 = scmp.eq.s32.totalorder %s21, 1
      %p58 = por %p56, %p57
      %p60 = scmp.ne.s32.totalorder %s43, %s59
      %p61 = scmp.eq.s32.totalorder %s21, 0
      %p62 = por %p60, %p61
      %s64 = sadd.s32 %s63, 1
      %p67 = scmp.eq.s32.totalorder %s15, 1
      %p68 = scmp.ne.s32.totalorder %s63, %s65
      %p69 = scmp.eq.s32.totalorder %s15, 0
      %p70 = por %p68, %p69
      %p71 = scmp.ne.s32.totalorder %s63, %s65
      %p72 = scmp.eq.s32.totalorder %s20, 1
      %p73 = por %p71, %p72
      %p74 = scmp.ne.s32.totalorder %s65, %s66
      %p75 = scmp.eq.s32.totalorder %s20, 0
      %p76 = por %p74, %p75
      %p77 = scmp.ne.s32.totalorder %s65, %s66
      %p78 = scmp.eq.s32.totalorder %s21, 1
      %p79 = por %p77, %p78
      %p81 = scmp.ne.s32.totalorder %s66, %s80
      %p82 = scmp.eq.s32.totalorder %s21, 0
      %p83 = por %p81, %p82
      %s85 = sadd.s32 %s84, 1
      %p88 = scmp.eq.s32.totalorder %s15, 1
      %p89 = scmp.ne.s32.totalorder %s84, %s86
      %p90 = scmp.eq.s32.totalorder %s15, 0
      %p91 = por %p89, %p90
      %p92 = scmp.ne.s32.totalorder %s84, %s86
      %p93 = scmp.eq.s32.totalorder %s20, 1
      %p94 = por %p92, %p93
      %p95 = scmp.ne.s32.totalorder %s86, %s87
      %p96 = scmp.eq.s32.totalorder %s20, 0
      %p97 = por %p95, %p96
      %p98 = scmp.ne.s32.totalorder %s86, %s87
      %p99 = scmp.eq.s32.totalorder %s21, 1
      %p100 = por %p98, %p99
      %p102 = scmp.ne.s32.totalorder %s87, %s101
      %p103 = scmp.eq.s32.totalorder %s21, 0
      %p104 = por %p102, %p103
      %s106 = sadd.s32 %s105, 1
      %p109 = scmp.eq.s32.totalorder %s15, 1
      %p110 = scmp.ne.s32.totalorder %s105, %s107
      %p111 = scmp.eq.s32.totalorder %s15, 0
      %p112 = por %p110, %p111
      %p113 = scmp.ne.s32.totalorder %s105, %s107
      %p114 = scmp.eq.s32.totalorder %s20, 1
      %p115 = por %p113, %p114
      %p116 = scmp.ne.s32.totalorder %s107, %s108
      %p117 = scmp.eq.s32.totalorder %s20, 0
      %p118 = por %p116, %p117
      %p119 = scmp.ne.s32.totalorder %s107, %s108
      %p120 = scmp.eq.s32.totalorder %s21, 1
      %p121 = por %p119, %p120
      %p123 = scmp.ne.s32.totalorder %s108, %s122
      %p124 = scmp.eq.s32.totalorder %s21, 0
      %p125 = por %p123, %p124
      %s127 = sadd.s32 %s126, 1
      %p130 = scmp.eq.s32.totalorder %s15, 1
      %p131 = scmp.ne.s32.totalorder %s126, %s128
      %p132 = scmp.eq.s32.totalorder %s15, 0
      %p133 = por %p131, %p132
      %p134 = scmp.ne.s32.totalorder %s126, %s128
      %p135 = scmp.eq.s32.totalorder %s20, 1
      %p136 = por %p134, %p135
      %p137 = scmp.ne.s32.totalorder %s128, %s129
      %p138 = scmp.eq.s32.totalorder %s20, 0
      %p139 = por %p137, %p138
      %p140 = scmp.ne.s32.totalorder %s128, %s129
      %p141 = scmp.eq.s32.totalorder %s21, 1
      %p142 = por %p140, %p141
      %p144 = scmp.ne.s32.totalorder %s129, %s143
      %p145 = scmp.eq.s32.totalorder %s21, 0
      %p146 = por %p144, %p145
      %s147 = ssub.s32 %s22, %s34
      %s148 = ssub.s32 %s23, %s30
      %s149 = sor.u32 %s147, %s148
      %p150 = scmp.eq.s32.totalorder %s149, 0
      %s152 = sadd.s32 %s151, 1
      %s153 = scalar_select %p150, %s151, %s152
      %p156 = pneg %p150
      %p157 = scmp.eq.s32.totalorder %s15, 1
      %p158 = por %p156, %p157
      %p159 = scmp.ne.s32.totalorder %s151, %s154
      %p160 = scmp.eq.s32.totalorder %s15, 0
      %p161 = por %p159, %p160
      %p162 = scmp.ne.s32.totalorder %s151, %s154
      %p163 = scmp.eq.s32.totalorder %s20, 1
      %p164 = por %p162, %p163
      %p165 = scmp.ne.s32.totalorder %s154, %s155
      %p166 = scmp.eq.s32.totalorder %s20, 0
      %p167 = por %p165, %p166
      %p168 = scmp.ne.s32.totalorder %s154, %s155
      %p169 = scmp.eq.s32.totalorder %s21, 1
      %p170 = por %p168, %p169
      %p172 = scmp.ne.s32.totalorder %s155, %s171
      %p173 = scmp.eq.s32.totalorder %s21, 0
      %p174 = por %p172, %p173
      %p175 = scmp.le.s32.totalorder 1, %s15
      %p176 = scmp.lt.s32.totalorder %s15, 3
      %p177 = pnand %p175, %p176
      %p178 = pneg %p177
      // Predicated region
      $region9: #{tpu_custom_call.1} parent=5 // pred_check
        _
      $region10: #{tpu_custom_call.1} parent=5 // pred_check_branch
        %180 = sbr.rel (%p177) target = $region12
      $region11: #{tpu_custom_call.1} parent=5 // pred_region
        %s181 = ssub.s32 %s15, 1
        // Predicated region
        $region13: #{tpu_custom_call.1} parent=11 // pred_check
          %p182 = pneg %p76
        $region14: #{tpu_custom_call.1} parent=11 // pred_check_branch
          %184 = sbr.rel (%p182) target = $region16
        $region15: #{tpu_custom_call.1} parent=11 // pred_region
          _
        $region16: #{tpu_custom_call.1} parent=11 // pred_fallthru
          _
        // Predicated region
        $region17: #{tpu_custom_call.1} parent=11 // pred_check
          %p185 = pneg %p97
        $region18: #{tpu_custom_call.1} parent=11 // pred_check_branch
          %187 = sbr.rel (%p185) target = $region20
        $region19: #{tpu_custom_call.1} parent=11 // pred_region
          %189 = vsyncadd [#allocation3], 0
          %s190 = sshll.u32 %s2, 4
          %s191 = int_to_ptr.hbm [resolvable:$true] %s190
          %s192 = sshll.u32 [#allocation2], 4
          %s193 = int_to_ptr.vmem [resolvable:$true] %s192
          %198 = dma.hbm_to_vmem [thread:$0]  %s191, 5120, %s193, [#allocation3], 256, 256, 16
        $region20: #{tpu_custom_call.1} parent=11 // pred_fallthru
          _
        // Predicated region
        $region21: #{tpu_custom_call.1} parent=11 // pred_check
          %p199 = pneg %p118
        $region22: #{tpu_custom_call.1} parent=11 // pred_check_branch
          %201 = sbr.rel (%p199) target = $region24
        $region23: #{tpu_custom_call.1} parent=11 // pred_region
          _
        $region24: #{tpu_custom_call.1} parent=11 // pred_fallthru
          _
        // Predicated region
        $region25: #{tpu_custom_call.1} parent=11 // pred_check
          %p202 = pneg %p139
        $region26: #{tpu_custom_call.1} parent=11 // pred_check_branch
          %204 = sbr.rel (%p202) target = $region28
        $region27: #{tpu_custom_call.1} parent=11 // pred_region
          _
        $region28: #{tpu_custom_call.1} parent=11 // pred_fallthru
          _
      $region12: #{tpu_custom_call.1} parent=5 // pred_fallthru
        _
      %p205 = scmp.lt.s32.totalorder %s15, 2
      // Predicated region
      $region29: #{tpu_custom_call.1} parent=5 // pred_check
        %p206 = pneg %p205
      $region30: #{tpu_custom_call.1} parent=5 // pred_check_branch
        %208 = sbr.rel (%p206) target = $region32
      $region31: #{tpu_custom_call.1} parent=5 // pred_region
        // Predicated region
        $region33: #{tpu_custom_call.1} parent=31 // pred_check
          %p209 = pneg %p49
        $region34: #{tpu_custom_call.1} parent=31 // pred_check_branch
          %211 = sbr.rel (%p209) target = $region36
        $region35: #{tpu_custom_call.1} parent=31 // pred_region
          %s212 = smul.u32 2, %s23
          %p213 = scmp.lt.s32.totalorder %s22, 1
          %s214 = scalar_select %p213, %s22, 1
          %p215 = scmp.lt.s32.totalorder %s212, 1
          %s216 = scalar_select %p215, %s212, 1
          %s217 = smul.addr %s214, 8
          %s218 = sadd.s32 %s216, %s217
          %s219 = smul.addr %s218, 8
          %s220 = scalar_lea.vmem %s0, %s219
          %s221 = smul.u32 2, %s23
        $region36: #{tpu_custom_call.1} parent=31 // pred_fallthru
          _
      $region32: #{tpu_custom_call.1} parent=5 // pred_fallthru
        _
      %p222 = scmp.le.s32.totalorder 1, %s15
      %p223 = scmp.lt.s32.totalorder %s15, 3
      %p224 = pnand %p222, %p223
      %p225 = pneg %p224
      // Predicated region
      $region37: #{tpu_custom_call.1} parent=5 // pred_check
        _
      $region38: #{tpu_custom_call.1} parent=5 // pred_check_branch
        %227 = sbr.rel (%p224) target = $region40
      $region39: #{tpu_custom_call.1} parent=5 // pred_region
        %s228 = ssub.s32 %s15, 1
        // Predicated region
        $region41: #{tpu_custom_call.1} parent=39 // pred_check
          %p229 = pneg %p97
        $region42: #{tpu_custom_call.1} parent=39 // pred_check_branch
          %231 = sbr.rel (%p229) target = $region44
        $region43: #{tpu_custom_call.1} parent=39 // pred_region
          %233 = dma.done [#allocation3], 5120
        $region44: #{tpu_custom_call.1} parent=39 // pred_fallthru
          _
        %s234 = smul.u32 2, %s25
        %p235 = scmp.lt.s32.totalorder %s24, 1
        %s236 = scalar_select %p235, %s24, 1
        %p237 = scmp.lt.s32.totalorder %s234, 1
        %s238 = scalar_select %p237, %s234, 1
        %s239 = smul.addr %s236, 8
        %s240 = sadd.s32 %s238, %s239
        %s241 = smul.addr %s240, 8
        %s242 = scalar_lea.vmem %s0, %s241
        %p243 = pneg %p55
        %p244 = pneg %p52
        %p245 = pneg %p76
        %p246 = pneg %p73
        %p247 = pneg %p97
        %p248 = pneg %p94
        %p249 = pneg %p118
        %p250 = pneg %p115
        %p251 = pneg %p139
        %p252 = pneg %p136
        %p253 = pneg %p167
        %p254 = pneg %p164
        %s255 = sand.u32 %s154, 1
        %s256 = scalar_lea.sflag [#allocation4], %s255
        %s257 = sand.u32 %s154, 1
        %s258 = smul.addr %s257, 64
        %s259 = scalar_lea.vmem [#allocation5], %s258
        %s260 = smul.u32 2, %s25
        %p261 = scmp.lt.s32.totalorder %s24, 1
        %s262 = scalar_select %p261, %s24, 1
        %p263 = scmp.lt.s32.totalorder %s260, 1
        %s264 = scalar_select %p263, %s260, 1
        %s265 = smul.addr %s262, 8
        %s266 = sadd.s32 %s264, %s265
        %s267 = smul.addr %s266, 8
        %s268 = scalar_lea.vmem %s0, %s267
        %s269 = smul.u32 2, %s25
        %s270 = smul.u32 2, %s25
        %v271 = vld [vmem:[%s1] sm:$0xff]
        %v272 = vld [vmem:[%s1 + $0x8] sm:$0xff]
        %v273 = vld [vmem:[%s1 + $0x10] sm:$0xff]
        %v274 = vld [vmem:[%s1 + $0x18] sm:$0xff]
        %v275 = vld [vmem:[%s1 + $0x20] sm:$0xff]
        %v276 = vld [vmem:[%s1 + $0x28] sm:$0xff]
        %v277 = vld [vmem:[%s1 + $0x30] sm:$0xff]
        %v278 = vld [vmem:[%s1 + $0x38] sm:$0xff]
        %v279 = vld [vmem:[%s1 + $0x40] sm:$0xff]
        %v280 = vld [vmem:[%s1 + $0x48] sm:$0xff]
        %v281 = vld [vmem:[%s1 + $0x50] sm:$0xff]
        %v282 = vld [vmem:[%s1 + $0x58] sm:$0xff]
        %v283 = vld [vmem:[%s1 + $0x60] sm:$0xff]
        %v284 = vld [vmem:[%s1 + $0x68] sm:$0xff]
        %v285 = vld [vmem:[%s1 + $0x70] sm:$0xff]
        %v286 = vld [vmem:[%s1 + $0x78] sm:$0xff]
        %v287 = vld [vmem:[%s1 + $0x80] sm:$0xff]
        %v288 = vld [vmem:[%s1 + $0x88] sm:$0xff]
        %v289 = vld [vmem:[%s1 + $0x90] sm:$0xff]
        %v290 = vld [vmem:[%s1 + $0x98] sm:$0xff]
        %v291 = vld [vmem:[%s3] sm:$0xff]
        %v292 = vld [vmem:[%s3 + $0x8] sm:$0xff]
        %v293 = vld [vmem:[%s3 + $0x10] sm:$0xff]
        %v294 = vld [vmem:[%s3 + $0x18] sm:$0xff]
        %v295 = vld [vmem:[#allocation2] sm:$0xff]
        %v296 = vld [vmem:[#allocation2 + $0x8] sm:$0xff]
        %v297 = vld [vmem:[#allocation2 + $0x10] sm:$0xff]
        %v298 = vld [vmem:[#allocation2 + $0x18] sm:$0xff]
        %v299 = vld [vmem:[#allocation2 + $0x20] sm:$0xff]
        %v300 = vld [vmem:[#allocation2 + $0x28] sm:$0xff]
        %v301 = vld [vmem:[#allocation2 + $0x30] sm:$0xff]
        %v302 = vld [vmem:[#allocation2 + $0x38] sm:$0xff]
        %v303 = vld [vmem:[#allocation2 + $0x40] sm:$0xff]
        %v304 = vld [vmem:[#allocation2 + $0x48] sm:$0xff]
        %v305 = vld [vmem:[#allocation2 + $0x50] sm:$0xff]
        %v306 = vld [vmem:[#allocation2 + $0x58] sm:$0xff]
        %v307 = vld [vmem:[#allocation2 + $0x60] sm:$0xff]
        %v308 = vld [vmem:[#allocation2 + $0x68] sm:$0xff]
        %v309 = vld [vmem:[#allocation2 + $0x70] sm:$0xff]
        %v310 = vld [vmem:[#allocation2 + $0x78] sm:$0xff]
        %v311 = vld [vmem:[#allocation2 + $0x80] sm:$0xff]
        %v312 = vld [vmem:[#allocation2 + $0x88] sm:$0xff]
        %v313 = vld [vmem:[#allocation2 + $0x90] sm:$0xff]
        %v314 = vld [vmem:[#allocation2 + $0x98] sm:$0xff]
        %v315 = vld [vmem:[#allocation2 + $0xa0] sm:$0xff]
        %v316 = vld [vmem:[#allocation2 + $0xa8] sm:$0xff]
        %v317 = vld [vmem:[#allocation2 + $0xb0] sm:$0xff]
        %v318 = vld [vmem:[#allocation2 + $0xb8] sm:$0xff]
        %v319 = vld [vmem:[#allocation2 + $0xc0] sm:$0xff]
        %v320 = vld [vmem:[#allocation2 + $0xc8] sm:$0xff]
        %v321 = vld [vmem:[#allocation2 + $0xd0] sm:$0xff]
        %v322 = vld [vmem:[#allocation2 + $0xd8] sm:$0xff]
        %v323 = vld [vmem:[#allocation2 + $0xe0] sm:$0xff]
        %v324 = vld [vmem:[#allocation2 + $0xe8] sm:$0xff]
        %v325 = vld [vmem:[#allocation2 + $0xf0] sm:$0xff]
        %v326 = vld [vmem:[#allocation2 + $0xf8] sm:$0xff]
        %v327 = vld [vmem:[#allocation2 + $0x100] sm:$0xff]
        %v328 = vld [vmem:[#allocation2 + $0x108] sm:$0xff]
        %v329 = vld [vmem:[#allocation2 + $0x110] sm:$0xff]
        %v330 = vld [vmem:[#allocation2 + $0x118] sm:$0xff]
        %v331 = vld [vmem:[#allocation2 + $0x120] sm:$0xff]
        %v332 = vld [vmem:[#allocation2 + $0x128] sm:$0xff]
        %v333 = vld [vmem:[#allocation2 + $0x130] sm:$0xff]
        %v334 = vld [vmem:[#allocation2 + $0x138] sm:$0xff]
        %v335 = vld [vmem:[%s4] sm:$0xff]
        %v336 = vld [vmem:[%s4 + $0x8] sm:$0xff]
        %v337 = vld [vmem:[%s4 + $0x10] sm:$0xff]
        %v338 = vld [vmem:[%s4 + $0x18] sm:$0xff]
        %v339 = vld [vmem:[%s4 + $0x20] sm:$0xff]
        %v340 = vld [vmem:[%s4 + $0x28] sm:$0xff]
        %v341 = vld [vmem:[%s4 + $0x30] sm:$0xff]
        %v342 = vld [vmem:[%s4 + $0x38] sm:$0xff]
        %v343 = vld [vmem:[%s268] sm:$0xff]
        %v344 = vld [vmem:[%s268 + $0x8] sm:$0xff]
        %v345 = vld [vmem:[%s268 + $0x10] sm:$0xff]
        %v346 = vld [vmem:[%s268 + $0x18] sm:$0xff]
        %v347 = vld [vmem:[%s268 + $0x20] sm:$0xff]
        %v348 = vld [vmem:[%s268 + $0x28] sm:$0xff]
        %v349 = vld [vmem:[%s268 + $0x30] sm:$0xff]
        %v350 = vld [vmem:[%s268 + $0x38] sm:$0xff]
        %vm351 = vcmask 261120
        %v353 = vsel %vm351, %v271, 0
        %v356 = vsel %vm351, %v272, 0
        %v359 = vsel %vm351, %v273, 0
        %v362 = vsel %vm351, %v274, 0
        %v365 = vsel %vm351, %v275, 0
        %v368 = vsel %vm351, %v276, 0
        %v371 = vsel %vm351, %v277, 0
        %v374 = vsel %vm351, %v278, 0
        %v377 = vsel %vm351, %v279, 0
        %v380 = vsel %vm351, %v280, 0
        %v383 = vsel %vm351, %v281, 0
        %v386 = vsel %vm351, %v282, 0
        %v389 = vsel %vm351, %v283, 0
        %v392 = vsel %vm351, %v284, 0
        %v395 = vsel %vm351, %v285, 0
        %v398 = vsel %vm351, %v286, 0
        %v401 = vsel %vm351, %v287, 0
        %v404 = vsel %vm351, %v288, 0
        %v407 = vsel %vm351, %v289, 0
        %v410 = vsel %vm351, %v290, 0
        %412 = vmatpush.msra.mxu0 0.0
        %413 = vmatpush.msra.mxu0 0.0
        %414 = vmatpush.msra.mxu0 0.0
        %415 = vmatpush.msra.mxu0 0.0
        %416 = vmatpush.msra.mxu0 0.0
        %417 = vmatpush.msra.mxu0 0.0
        %418 = vmatpush.msra.mxu0 0.0
        %419 = vmatpush.msra.mxu0 0.0
        %420 = vmatpush.msra.mxu0 0.0
        %421 = vmatpush.msra.mxu0 0.0
        %422 = vmatpush.msra.mxu0 0.0
        %423 = vmatpush.msra.mxu0 0.0
        %424 = vmatpush.msra.mxu0 %v349
        %425 = vmatpush.msra.mxu0 %v347
        %426 = vmatpush.msra.mxu0 %v345
        %427 = vmatpush.msra.mxu0 %v343
        %428 = vmatmul.f32.gmra.mxu0 %v353
        %v429 = vpop.f32.mrf.mxu0
        %v430 = vadd.f32 %v295, %v429
        %431 = vmatmul.f32.gmra.mxu0 %v356
        %v432 = vpop.f32.mrf.mxu0
        %v433 = vadd.f32 %v297, %v432
        %434 = vmatmul.f32.gmra.mxu0 %v359
        %v435 = vpop.f32.mrf.mxu0
        %v436 = vadd.f32 %v299, %v435
        %437 = vmatmul.f32.gmra.mxu0 %v362
        %v438 = vpop.f32.mrf.mxu0
        %v439 = vadd.f32 %v301, %v438
        %440 = vmatmul.f32.gmra.mxu0 %v365
        %v441 = vpop.f32.mrf.mxu0
        %v442 = vadd.f32 %v303, %v441
        %443 = vmatmul.f32.gmra.mxu0 %v368
        %v444 = vpop.f32.mrf.mxu0
        %v445 = vadd.f32 %v305, %v444
        %446 = vmatmul.f32.gmra.mxu0 %v371
        %v447 = vpop.f32.mrf.mxu0
        %v448 = vadd.f32 %v307, %v447
        %449 = vmatmul.f32.gmra.mxu0 %v374
        %v450 = vpop.f32.mrf.mxu0
        %v451 = vadd.f32 %v309, %v450
        %452 = vmatmul.f32.gmra.mxu0 %v377
        %v453 = vpop.f32.mrf.mxu0
        %v454 = vadd.f32 %v311, %v453
        %455 = vmatmul.f32.gmra.mxu0 %v380
        %v456 = vpop.f32.mrf.mxu0
        %v457 = vadd.f32 %v313, %v456
        %458 = vmatmul.f32.gmra.mxu0 %v383
        %v459 = vpop.f32.mrf.mxu0
        %v460 = vadd.f32 %v315, %v459
        %461 = vmatmul.f32.gmra.mxu0 %v386
        %v462 = vpop.f32.mrf.mxu0
        %v463 = vadd.f32 %v317, %v462
        %464 = vmatmul.f32.gmra.mxu0 %v389
        %v465 = vpop.f32.mrf.mxu0
        %v466 = vadd.f32 %v319, %v465
        %467 = vmatmul.f32.gmra.mxu0 %v392
        %v468 = vpop.f32.mrf.mxu0
        %v469 = vadd.f32 %v321, %v468
        %470 = vmatmul.f32.gmra.mxu0 %v395
        %v471 = vpop.f32.mrf.mxu0
        %v472 = vadd.f32 %v323, %v471
        %473 = vmatmul.f32.gmra.mxu0 %v398
        %v474 = vpop.f32.mrf.mxu0
        %v475 = vadd.f32 %v325, %v474
        %476 = vmatmul.f32.gmra.mxu0 %v401
        %v477 = vpop.f32.mrf.mxu0
        %v478 = vadd.f32 %v327, %v477
        %479 = vmatmul.f32.gmra.mxu0 %v404
        %v480 = vpop.f32.mrf.mxu0
        %v481 = vadd.f32 %v329, %v480
        %482 = vmatmul.f32.gmra.mxu0 %v407
        %v483 = vpop.f32.mrf.mxu0
        %v484 = vadd.f32 %v331, %v483
        %485 = vmatmul.f32.gmra.mxu0 %v410
        %v486 = vpop.f32.mrf.mxu0
        %v487 = vadd.f32 %v333, %v486
        %488 = vdwg.mxu0
        %489 = vmatpush.msra.mxu0 0.0
        %490 = vmatpush.msra.mxu0 0.0
        %491 = vmatpush.msra.mxu0 0.0
        %492 = vmatpush.msra.mxu0 0.0
        %493 = vmatpush.msra.mxu0 0.0
        %494 = vmatpush.msra.mxu0 0.0
        %495 = vmatpush.msra.mxu0 0.0
        %496 = vmatpush.msra.mxu0 0.0
        %497 = vmatpush.msra.mxu0 0.0
        %498 = vmatpush.msra.mxu0 0.0
        %499 = vmatpush.msra.mxu0 0.0
        %500 = vmatpush.msra.mxu0 0.0
        %501 = vmatpush.msra.mxu0 %v350
        %502 = vmatpush.msra.mxu0 %v348
        %503 = vmatpush.msra.mxu0 %v346
        %504 = vmatpush.msra.mxu0 %v344
        %505 = vmatmul.f32.gmra.mxu0 %v353
        %v506 = vpop.f32.mrf.mxu0
        %v507 = vadd.f32 %v296, %v506
        %508 = vmatmul.f32.gmra.mxu0 %v356
        %v509 = vpop.f32.mrf.mxu0
        %v510 = vadd.f32 %v298, %v509
        %511 = vmatmul.f32.gmra.mxu0 %v359
        %v512 = vpop.f32.mrf.mxu0
        %v513 = vadd.f32 %v300, %v512
        %514 = vmatmul.f32.gmra.mxu0 %v362
        %v515 = vpop.f32.mrf.mxu0
        %v516 = vadd.f32 %v302, %v515
        %517 = vmatmul.f32.gmra.mxu0 %v365
        %v518 = vpop.f32.mrf.mxu0
        %v519 = vadd.f32 %v304, %v518
        %520 = vmatmul.f32.gmra.mxu0 %v368
        %v521 = vpop.f32.mrf.mxu0
        %v522 = vadd.f32 %v306, %v521
        %523 = vmatmul.f32.gmra.mxu0 %v371
        %v524 = vpop.f32.mrf.mxu0
        %v525 = vadd.f32 %v308, %v524
        %526 = vmatmul.f32.gmra.mxu0 %v374
        %v527 = vpop.f32.mrf.mxu0
        %v528 = vadd.f32 %v310, %v527
        %529 = vmatmul.f32.gmra.mxu0 %v377
        %v530 = vpop.f32.mrf.mxu0
        %v531 = vadd.f32 %v312, %v530
        %532 = vmatmul.f32.gmra.mxu0 %v380
        %v533 = vpop.f32.mrf.mxu0
        %v534 = vadd.f32 %v314, %v533
        %535 = vmatmul.f32.gmra.mxu0 %v383
        %v536 = vpop.f32.mrf.mxu0
        %v537 = vadd.f32 %v316, %v536
        %538 = vmatmul.f32.gmra.mxu0 %v386
        %v539 = vpop.f32.mrf.mxu0
        %v540 = vadd.f32 %v318, %v539
        %541 = vmatmul.f32.gmra.mxu0 %v389
        %v542 = vpop.f32.mrf.mxu0
        %v543 = vadd.f32 %v320, %v542
        %544 = vmatmul.f32.gmra.mxu0 %v392
        %v545 = vpop.f32.mrf.mxu0
        %v546 = vadd.f32 %v322, %v545
        %547 = vmatmul.f32.gmra.mxu0 %v395
        %v548 = vpop.f32.mrf.mxu0
        %v549 = vadd.f32 %v324, %v548
        %550 = vmatmul.f32.gmra.mxu0 %v398
        %v551 = vpop.f32.mrf.mxu0
        %v552 = vadd.f32 %v326, %v551
        %553 = vmatmul.f32.gmra.mxu0 %v401
        %v554 = vpop.f32.mrf.mxu0
        %v555 = vadd.f32 %v328, %v554
        %556 = vmatmul.f32.gmra.mxu0 %v404
        %v557 = vpop.f32.mrf.mxu0
        %v558 = vadd.f32 %v330, %v557
        %559 = vmatmul.f32.gmra.mxu0 %v407
        %v560 = vpop.f32.mrf.mxu0
        %v561 = vadd.f32 %v332, %v560
        %562 = vmatmul.f32.gmra.mxu0 %v410
        %v563 = vpop.f32.mrf.mxu0
        %v564 = vadd.f32 %v334, %v563
        %565 = vdwg.mxu0
        %v566 = vmul.f32 %v442, 0.5
        %v567 = vmul.f32 %v519, 0.5
        %v568 = vmul.f32 %v445, 0.5
        %v569 = vmul.f32 %v522, 0.5
        %v570 = vmul.f32 %v448, 0.5
        %v571 = vmul.f32 %v525, 0.5
        %v572 = vmul.f32 %v451, 0.5
        %v573 = vmul.f32 %v528, 0.5
        %v574 = vmul.f32 %v454, 0.5
        %v575 = vmul.f32 %v531, 0.5
        %v576 = vmul.f32 %v457, 0.5
        %v577 = vmul.f32 %v534, 0.5
        %v578 = vmul.f32 %v460, 0.5
        %v579 = vmul.f32 %v537, 0.5
        %v580 = vmul.f32 %v463, 0.5
        %v581 = vmul.f32 %v540, 0.5
        %v582 = vmul.f32 %v466, 0.5
        %v583 = vmul.f32 %v543, 0.5
        %v584 = vmul.f32 %v469, 0.5
        %v585 = vmul.f32 %v546, 0.5
        %v586 = vmul.f32 %v472, 0.5
        %v587 = vmul.f32 %v549, 0.5
        %v588 = vmul.f32 %v475, 0.5
        %v589 = vmul.f32 %v552, 0.5
        %v590 = vmul.f32 %v478, 0.5
        %v591 = vmul.f32 %v555, 0.5
        %v592 = vmul.f32 %v481, 0.5
        %v593 = vmul.f32 %v558, 0.5
        %v594 = vmul.f32 %v484, 0.5
        %v595 = vmul.f32 %v561, 0.5
        %v596 = vmul.f32 %v487, 0.5
        %v597 = vmul.f32 %v564, 0.5
        %v598 = vmul.f32 %v442, 0.70710677
        %v599 = vmul.f32 %v519, 0.70710677
        %v600 = vmul.f32 %v445, 0.70710677
        %v601 = vmul.f32 %v522, 0.70710677
        %v602 = vmul.f32 %v448, 0.70710677
        %v603 = vmul.f32 %v525, 0.70710677
        %v604 = vmul.f32 %v451, 0.70710677
        %v605 = vmul.f32 %v528, 0.70710677
        %v606 = vmul.f32 %v454, 0.70710677
        %v607 = vmul.f32 %v531, 0.70710677
        %v608 = vmul.f32 %v457, 0.70710677
        %v609 = vmul.f32 %v534, 0.70710677
        %v610 = vmul.f32 %v460, 0.70710677
        %v611 = vmul.f32 %v537, 0.70710677
        %v612 = vmul.f32 %v463, 0.70710677
        %v613 = vmul.f32 %v540, 0.70710677
        %v614 = vmul.f32 %v466, 0.70710677
        %v615 = vmul.f32 %v543, 0.70710677
        %v616 = vmul.f32 %v469, 0.70710677
        %v617 = vmul.f32 %v546, 0.70710677
        %v618 = vmul.f32 %v472, 0.70710677
        %v619 = vmul.f32 %v549, 0.70710677
        %v620 = vmul.f32 %v475, 0.70710677
        %v621 = vmul.f32 %v552, 0.70710677
        %v622 = vmul.f32 %v478, 0.70710677
        %v623 = vmul.f32 %v555, 0.70710677
        %v624 = vmul.f32 %v481, 0.70710677
        %v625 = vmul.f32 %v558, 0.70710677
        %v626 = vmul.f32 %v484, 0.70710677
        %v627 = vmul.f32 %v561, 0.70710677
        %v628 = vmul.f32 %v487, 0.70710677
        %v629 = vmul.f32 %v564, 0.70710677
        %v630 = vmul.f32 %v598, %v598
        %v631 = vmin.f32 16.0, %v630
        %v632 = vmul.f32 %v631, 2.1237322e-06
        %v633 = vadd.f32 %v632, 0.00028619796
        %v634 = vmul.f32 %v631, %v633
        %v635 = vadd.f32 %v634, 0.0036580483
        %v636 = vmul.f32 %v631, %v635
        %v637 = vadd.f32 %v636, 0.05243302
        %v638 = vmul.f32 %v631, %v637
        %v639 = vadd.f32 %v638, 0.18741608
        %v640 = vmul.f32 %v631, %v639
        %v641 = vadd.f32 %v640, 1.1283791
        %v642 = vmul.f32 %v598, %v641
        %v643 = vmul.f32 %v631, 3.8918573e-05
        %v644 = vadd.f32 %v643, 0.001143296
        %v645 = vmul.f32 %v631, %v644
        %v646 = vadd.f32 %v645, 0.014752088
        %v647 = vmul.f32 %v631, %v646
        %v648 = vadd.f32 %v647, 0.112945676
        %v649 = vmul.f32 %v631, %v648
        %v650 = vadd.f32 %v649, 0.4994258
        %v651 = vmul.f32 %v631, %v650
        %v652 = vadd.f32 %v651, 1.0
        %v653 = vrcp.pop %v652
        %v654 = vmul.f32 %v652, %v653
        %v655 = vsub.f32 1.0, %v654
        %v656 = vmul.f32 %v653, %v655
        %v657 = vadd.f32 %v653, %v656
        %vm658 = vweird.f32 %v652
        %vm659 = vweird.f32 %v653
        %vm660 = vmor %vm658, %vm659
        %v661 = vsel %vm660, %v653, %v657
        %v662 = vand.u32 2147483647, %v652
        %vm663 = vcmp.eq.f32.partialorder %v662, 8.507059e+37
        %v664 = vand.u32 %v652, 2147483648
        %v665 = vor.u32 1.1754944e-38, %v664
        %v666 = vsel %vm663, %v665, %v661
        %v667 = vmul.f32 %v642, %v666
        %v668 = vmin.f32 %v667, 1.0
        %v669 = vmax.f32 %v668, -1.0
        %v670 = vmul.f32 %v599, %v599
        %v671 = vmin.f32 16.0, %v670
        %v672 = vmul.f32 %v671, 2.1237322e-06
        %v673 = vadd.f32 %v672, 0.00028619796
        %v674 = vmul.f32 %v671, %v673
        %v675 = vadd.f32 %v674, 0.0036580483
        %v676 = vmul.f32 %v671, %v675
        %v677 = vadd.f32 %v676, 0.05243302
        %v678 = vmul.f32 %v671, %v677
        %v679 = vadd.f32 %v678, 0.18741608
        %v680 = vmul.f32 %v671, %v679
        %v681 = vadd.f32 %v680, 1.1283791
        %v682 = vmul.f32 %v599, %v681
        %v683 = vmul.f32 %v671, 3.8918573e-05
        %v684 = vadd.f32 %v683, 0.001143296
        %v685 = vmul.f32 %v671, %v684
        %v686 = vadd.f32 %v685, 0.014752088
        %v687 = vmul.f32 %v671, %v686
        %v688 = vadd.f32 %v687, 0.112945676
        %v689 = vmul.f32 %v671, %v688
        %v690 = vadd.f32 %v689, 0.4994258
        %v691 = vmul.f32 %v671, %v690
        %v692 = vadd.f32 %v691, 1.0
        %v693 = vrcp.pop %v692
        %v694 = vmul.f32 %v692, %v693
        %v695 = vsub.f32 1.0, %v694
        %v696 = vmul.f32 %v693, %v695
        %v697 = vadd.f32 %v693, %v696
        %vm698 = vweird.f32 %v692
        %vm699 = vweird.f32 %v693
        %vm700 = vmor %vm698, %vm699
        %v701 = vsel %vm700, %v693, %v697
        %v702 = vand.u32 2147483647, %v692
        %vm703 = vcmp.eq.f32.partialorder %v702, 8.507059e+37
        %v704 = vand.u32 %v692, 2147483648
        %v705 = vor.u32 1.1754944e-38, %v704
        %v706 = vsel %vm703, %v705, %v701
        %v707 = vmul.f32 %v682, %v706
        %v708 = vmin.f32 %v707, 1.0
        %v709 = vmax.f32 %v708, -1.0
        %v710 = vmul.f32 %v600, %v600
        %v711 = vmin.f32 16.0, %v710
        %v712 = vmul.f32 %v711, 2.1237322e-06
        %v713 = vadd.f32 %v712, 0.00028619796
        %v714 = vmul.f32 %v711, %v713
        %v715 = vadd.f32 %v714, 0.0036580483
        %v716 = vmul.f32 %v711, %v715
        %v717 = vadd.f32 %v716, 0.05243302
        %v718 = vmul.f32 %v711, %v717
        %v719 = vadd.f32 %v718, 0.18741608
        %v720 = vmul.f32 %v711, %v719
        %v721 = vadd.f32 %v720, 1.1283791
        %v722 = vmul.f32 %v600, %v721
        %v723 = vmul.f32 %v711, 3.8918573e-05
        %v724 = vadd.f32 %v723, 0.001143296
        %v725 = vmul.f32 %v711, %v724
        %v726 = vadd.f32 %v725, 0.014752088
        %v727 = vmul.f32 %v711, %v726
        %v728 = vadd.f32 %v727, 0.112945676
        %v729 = vmul.f32 %v711, %v728
        %v730 = vadd.f32 %v729, 0.4994258
        %v731 = vmul.f32 %v711, %v730
        %v732 = vadd.f32 %v731, 1.0
        %v733 = vrcp.pop %v732
        %v734 = vmul.f32 %v732, %v733
        %v735 = vsub.f32 1.0, %v734
        %v736 = vmul.f32 %v733, %v735
        %v737 = vadd.f32 %v733, %v736
        %vm738 = vweird.f32 %v732
        %vm739 = vweird.f32 %v733
        %vm740 = vmor %vm738, %vm739
        %v741 = vsel %vm740, %v733, %v737
        %v742 = vand.u32 2147483647, %v732
        %vm743 = vcmp.eq.f32.partialorder %v742, 8.507059e+37
        %v744 = vand.u32 %v732, 2147483648
        %v745 = vor.u32 1.1754944e-38, %v744
        %v746 = vsel %vm743, %v745, %v741
        %v747 = vmul.f32 %v722, %v746
        %v748 = vmin.f32 %v747, 1.0
        %v749 = vmax.f32 %v748, -1.0
        %v750 = vmul.f32 %v601, %v601
        %v751 = vmin.f32 16.0, %v750
        %v752 = vmul.f32 %v751, 2.1237322e-06
        %v753 = vadd.f32 %v752, 0.00028619796
        %v754 = vmul.f32 %v751, %v753
        %v755 = vadd.f32 %v754, 0.0036580483
        %v756 = vmul.f32 %v751, %v755
        %v757 = vadd.f32 %v756, 0.05243302
        %v758 = vmul.f32 %v751, %v757
        %v759 = vadd.f32 %v758, 0.18741608
        %v760 = vmul.f32 %v751, %v759
        %v761 = vadd.f32 %v760, 1.1283791
        %v762 = vmul.f32 %v601, %v761
        %v763 = vmul.f32 %v751, 3.8918573e-05
        %v764 = vadd.f32 %v763, 0.001143296
        %v765 = vmul.f32 %v751, %v764
        %v766 = vadd.f32 %v765, 0.014752088
        %v767 = vmul.f32 %v751, %v766
        %v768 = vadd.f32 %v767, 0.112945676
        %v769 = vmul.f32 %v751, %v768
        %v770 = vadd.f32 %v769, 0.4994258
        %v771 = vmul.f32 %v751, %v770
        %v772 = vadd.f32 %v771, 1.0
        %v773 = vrcp.pop %v772
        %v774 = vmul.f32 %v772, %v773
        %v775 = vsub.f32 1.0, %v774
        %v776 = vmul.f32 %v773, %v775
        %v777 = vadd.f32 %v773, %v776
        %vm778 = vweird.f32 %v772
        %vm779 = vweird.f32 %v773
        %vm780 = vmor %vm778, %vm779
        %v781 = vsel %vm780, %v773, %v777
        %v782 = vand.u32 2147483647, %v772
        %vm783 = vcmp.eq.f32.partialorder %v782, 8.507059e+37
        %v784 = vand.u32 %v772, 2147483648
        %v785 = vor.u32 1.1754944e-38, %v784
        %v786 = vsel %vm783, %v785, %v781
        %v787 = vmul.f32 %v762, %v786
        %v788 = vmin.f32 %v787, 1.0
        %v789 = vmax.f32 %v788, -1.0
        %v790 = vmul.f32 %v602, %v602
        %v791 = vmin.f32 16.0, %v790
        %v792 = vmul.f32 %v791, 2.1237322e-06
        %v793 = vadd.f32 %v792, 0.00028619796
        %v794 = vmul.f32 %v791, %v793
        %v795 = vadd.f32 %v794, 0.0036580483
        %v796 = vmul.f32 %v791, %v795
        %v797 = vadd.f32 %v796, 0.05243302
        %v798 = vmul.f32 %v791, %v797
        %v799 = vadd.f32 %v798, 0.18741608
        %v800 = vmul.f32 %v791, %v799
        %v801 = vadd.f32 %v800, 1.1283791
        %v802 = vmul.f32 %v602, %v801
        %v803 = vmul.f32 %v791, 3.8918573e-05
        %v804 = vadd.f32 %v803, 0.001143296
        %v805 = vmul.f32 %v791, %v804
        %v806 = vadd.f32 %v805, 0.014752088
        %v807 = vmul.f32 %v791, %v806
        %v808 = vadd.f32 %v807, 0.112945676
        %v809 = vmul.f32 %v791, %v808
        %v810 = vadd.f32 %v809, 0.4994258
        %v811 = vmul.f32 %v791, %v810
        %v812 = vadd.f32 %v811, 1.0
        %v813 = vrcp.pop %v812
        %v814 = vmul.f32 %v812, %v813
        %v815 = vsub.f32 1.0, %v814
        %v816 = vmul.f32 %v813, %v815
        %v817 = vadd.f32 %v813, %v816
        %vm818 = vweird.f32 %v812
        %vm819 = vweird.f32 %v813
        %vm820 = vmor %vm818, %vm819
        %v821 = vsel %vm820, %v813, %v817
        %v822 = vand.u32 2147483647, %v812
        %vm823 = vcmp.eq.f32.partialorder %v822, 8.507059e+37
        %v824 = vand.u32 %v812, 2147483648
        %v825 = vor.u32 1.1754944e-38, %v824
        %v826 = vsel %vm823, %v825, %v821
        %v827 = vmul.f32 %v802, %v826
        %v828 = vmin.f32 %v827, 1.0
        %v829 = vmax.f32 %v828, -1.0
        %v830 = vmul.f32 %v603, %v603
        %v831 = vmin.f32 16.0, %v830
        %v832 = vmul.f32 %v831, 2.1237322e-06
        %v833 = vadd.f32 %v832, 0.00028619796
        %v834 = vmul.f32 %v831, %v833
        %v835 = vadd.f32 %v834, 0.0036580483
        %v836 = vmul.f32 %v831, %v835
        %v837 = vadd.f32 %v836, 0.05243302
        %v838 = vmul.f32 %v831, %v837
        %v839 = vadd.f32 %v838, 0.18741608
        %v840 = vmul.f32 %v831, %v839
        %v841 = vadd.f32 %v840, 1.1283791
        %v842 = vmul.f32 %v603, %v841
        %v843 = vmul.f32 %v831, 3.8918573e-05
        %v844 = vadd.f32 %v843, 0.001143296
        %v845 = vmul.f32 %v831, %v844
        %v846 = vadd.f32 %v845, 0.014752088
        %v847 = vmul.f32 %v831, %v846
        %v848 = vadd.f32 %v847, 0.112945676
        %v849 = vmul.f32 %v831, %v848
        %v850 = vadd.f32 %v849, 0.4994258
        %v851 = vmul.f32 %v831, %v850
        %v852 = vadd.f32 %v851, 1.0
        %v853 = vrcp.pop %v852
        %v854 = vmul.f32 %v852, %v853
        %v855 = vsub.f32 1.0, %v854
        %v856 = vmul.f32 %v853, %v855
        %v857 = vadd.f32 %v853, %v856
        %vm858 = vweird.f32 %v852
        %vm859 = vweird.f32 %v853
        %vm860 = vmor %vm858, %vm859
        %v861 = vsel %vm860, %v853, %v857
        %v862 = vand.u32 2147483647, %v852
        %vm863 = vcmp.eq.f32.partialorder %v862, 8.507059e+37
        %v864 = vand.u32 %v852, 2147483648
        %v865 = vor.u32 1.1754944e-38, %v864
        %v866 = vsel %vm863, %v865, %v861
        %v867 = vmul.f32 %v842, %v866
        %v868 = vmin.f32 %v867, 1.0
        %v869 = vmax.f32 %v868, -1.0
        %v870 = vmul.f32 %v604, %v604
        %v871 = vmin.f32 16.0, %v870
        %v872 = vmul.f32 %v871, 2.1237322e-06
        %v873 = vadd.f32 %v872, 0.00028619796
        %v874 = vmul.f32 %v871, %v873
        %v875 = vadd.f32 %v874, 0.0036580483
        %v876 = vmul.f32 %v871, %v875
        %v877 = vadd.f32 %v876, 0.05243302
        %v878 = vmul.f32 %v871, %v877
        %v879 = vadd.f32 %v878, 0.18741608
        %v880 = vmul.f32 %v871, %v879
        %v881 = vadd.f32 %v880, 1.1283791
        %v882 = vmul.f32 %v604, %v881
        %v883 = vmul.f32 %v871, 3.8918573e-05
        %v884 = vadd.f32 %v883, 0.001143296
        %v885 = vmul.f32 %v871, %v884
        %v886 = vadd.f32 %v885, 0.014752088
        %v887 = vmul.f32 %v871, %v886
        %v888 = vadd.f32 %v887, 0.112945676
        %v889 = vmul.f32 %v871, %v888
        %v890 = vadd.f32 %v889, 0.4994258
        %v891 = vmul.f32 %v871, %v890
        %v892 = vadd.f32 %v891, 1.0
        %v893 = vrcp.pop %v892
        %v894 = vmul.f32 %v892, %v893
        %v895 = vsub.f32 1.0, %v894
        %v896 = vmul.f32 %v893, %v895
        %v897 = vadd.f32 %v893, %v896
        %vm898 = vweird.f32 %v892
        %vm899 = vweird.f32 %v893
        %vm900 = vmor %vm898, %vm899
        %v901 = vsel %vm900, %v893, %v897
        %v902 = vand.u32 2147483647, %v892
        %vm903 = vcmp.eq.f32.partialorder %v902, 8.507059e+37
        %v904 = vand.u32 %v892, 2147483648
        %v905 = vor.u32 1.1754944e-38, %v904
        %v906 = vsel %vm903, %v905, %v901
        %v907 = vmul.f32 %v882, %v906
        %v908 = vmin.f32 %v907, 1.0
        %v909 = vmax.f32 %v908, -1.0
        %v910 = vmul.f32 %v605, %v605
        %v911 = vmin.f32 16.0, %v910
        %v912 = vmul.f32 %v911, 2.1237322e-06
        %v913 = vadd.f32 %v912, 0.00028619796
        %v914 = vmul.f32 %v911, %v913
        %v915 = vadd.f32 %v914, 0.0036580483
        %v916 = vmul.f32 %v911, %v915
        %v917 = vadd.f32 %v916, 0.05243302
        %v918 = vmul.f32 %v911, %v917
        %v919 = vadd.f32 %v918, 0.18741608
        %v920 = vmul.f32 %v911, %v919
        %v921 = vadd.f32 %v920, 1.1283791
        %v922 = vmul.f32 %v605, %v921
        %v923 = vmul.f32 %v911, 3.8918573e-05
        %v924 = vadd.f32 %v923, 0.001143296
        %v925 = vmul.f32 %v911, %v924
        %v926 = vadd.f32 %v925, 0.014752088
        %v927 = vmul.f32 %v911, %v926
        %v928 = vadd.f32 %v927, 0.112945676
        %v929 = vmul.f32 %v911, %v928
        %v930 = vadd.f32 %v929, 0.4994258
        %v931 = vmul.f32 %v911, %v930
        %v932 = vadd.f32 %v931, 1.0
        %v933 = vrcp.pop %v932
        %v934 = vmul.f32 %v932, %v933
        %v935 = vsub.f32 1.0, %v934
        %v936 = vmul.f32 %v933, %v935
        %v937 = vadd.f32 %v933, %v936
        %vm938 = vweird.f32 %v932
        %vm939 = vweird.f32 %v933
        %vm940 = vmor %vm938, %vm939
        %v941 = vsel %vm940, %v933, %v937
        %v942 = vand.u32 2147483647, %v932
        %vm943 = vcmp.eq.f32.partialorder %v942, 8.507059e+37
        %v944 = vand.u32 %v932, 2147483648
        %v945 = vor.u32 1.1754944e-38, %v944
        %v946 = vsel %vm943, %v945, %v941
        %v947 = vmul.f32 %v922, %v946
        %v948 = vmin.f32 %v947, 1.0
        %v949 = vmax.f32 %v948, -1.0
        %v950 = vmul.f32 %v606, %v606
        %v951 = vmin.f32 16.0, %v950
        %v952 = vmul.f32 %v951, 2.1237322e-06
        %v953 = vadd.f32 %v952, 0.00028619796
        %v954 = vmul.f32 %v951, %v953
        %v955 = vadd.f32 %v954, 0.0036580483
        %v956 = vmul.f32 %v951, %v955
        %v957 = vadd.f32 %v956, 0.05243302
        %v958 = vmul.f32 %v951, %v957
        %v959 = vadd.f32 %v958, 0.18741608
        %v960 = vmul.f32 %v951, %v959
        %v961 = vadd.f32 %v960, 1.1283791
        %v962 = vmul.f32 %v606, %v961
        %v963 = vmul.f32 %v951, 3.8918573e-05
        %v964 = vadd.f32 %v963, 0.001143296
        %v965 = vmul.f32 %v951, %v964
        %v966 = vadd.f32 %v965, 0.014752088
        %v967 = vmul.f32 %v951, %v966
        %v968 = vadd.f32 %v967, 0.112945676
        %v969 = vmul.f32 %v951, %v968
        %v970 = vadd.f32 %v969, 0.4994258
        %v971 = vmul.f32 %v951, %v970
        %v972 = vadd.f32 %v971, 1.0
        %v973 = vrcp.pop %v972
        %v974 = vmul.f32 %v972, %v973
        %v975 = vsub.f32 1.0, %v974
        %v976 = vmul.f32 %v973, %v975
        %v977 = vadd.f32 %v973, %v976
        %vm978 = vweird.f32 %v972
        %vm979 = vweird.f32 %v973
        %vm980 = vmor %vm978, %vm979
        %v981 = vsel %vm980, %v973, %v977
        %v982 = vand.u32 2147483647, %v972
        %vm983 = vcmp.eq.f32.partialorder %v982, 8.507059e+37
        %v984 = vand.u32 %v972, 2147483648
        %v985 = vor.u32 1.1754944e-38, %v984
        %v986 = vsel %vm983, %v985, %v981
        %v987 = vmul.f32 %v962, %v986
        %v988 = vmin.f32 %v987, 1.0
        %v989 = vmax.f32 %v988, -1.0
        %v990 = vmul.f32 %v607, %v607
        %v991 = vmin.f32 16.0, %v990
        %v992 = vmul.f32 %v991, 2.1237322e-06
        %v993 = vadd.f32 %v992, 0.00028619796
        %v994 = vmul.f32 %v991, %v993
        %v995 = vadd.f32 %v994, 0.0036580483
        %v996 = vmul.f32 %v991, %v995
        %v997 = vadd.f32 %v996, 0.05243302
        %v998 = vmul.f32 %v991, %v997
        %v999 = vadd.f32 %v998, 0.18741608
        %v1000 = vmul.f32 %v991, %v999
        %v1001 = vadd.f32 %v1000, 1.1283791
        %v1002 = vmul.f32 %v607, %v1001
        %v1003 = vmul.f32 %v991, 3.8918573e-05
        %v1004 = vadd.f32 %v1003, 0.001143296
        %v1005 = vmul.f32 %v991, %v1004
        %v1006 = vadd.f32 %v1005, 0.014752088
        %v1007 = vmul.f32 %v991, %v1006
        %v1008 = vadd.f32 %v1007, 0.112945676
        %v1009 = vmul.f32 %v991, %v1008
        %v1010 = vadd.f32 %v1009, 0.4994258
        %v1011 = vmul.f32 %v991, %v1010
        %v1012 = vadd.f32 %v1011, 1.0
        %v1013 = vrcp.pop %v1012
        %v1014 = vmul.f32 %v1012, %v1013
        %v1015 = vsub.f32 1.0, %v1014
        %v1016 = vmul.f32 %v1013, %v1015
        %v1017 = vadd.f32 %v1013, %v1016
        %vm1018 = vweird.f32 %v1012
        %vm1019 = vweird.f32 %v1013
        %vm1020 = vmor %vm1018, %vm1019
        %v1021 = vsel %vm1020, %v1013, %v1017
        %v1022 = vand.u32 2147483647, %v1012
        %vm1023 = vcmp.eq.f32.partialorder %v1022, 8.507059e+37
        %v1024 = vand.u32 %v1012, 2147483648
        %v1025 = vor.u32 1.1754944e-38, %v1024
        %v1026 = vsel %vm1023, %v1025, %v1021
        %v1027 = vmul.f32 %v1002, %v1026
        %v1028 = vmin.f32 %v1027, 1.0
        %v1029 = vmax.f32 %v1028, -1.0
        %v1030 = vmul.f32 %v608, %v608
        %v1031 = vmin.f32 16.0, %v1030
        %v1032 = vmul.f32 %v1031, 2.1237322e-06
        %v1033 = vadd.f32 %v1032, 0.00028619796
        %v1034 = vmul.f32 %v1031, %v1033
        %v1035 = vadd.f32 %v1034, 0.0036580483
        %v1036 = vmul.f32 %v1031, %v1035
        %v1037 = vadd.f32 %v1036, 0.05243302
        %v1038 = vmul.f32 %v1031, %v1037
        %v1039 = vadd.f32 %v1038, 0.18741608
        %v1040 = vmul.f32 %v1031, %v1039
        %v1041 = vadd.f32 %v1040, 1.1283791
        %v1042 = vmul.f32 %v608, %v1041
        %v1043 = vmul.f32 %v1031, 3.8918573e-05
        %v1044 = vadd.f32 %v1043, 0.001143296
        %v1045 = vmul.f32 %v1031, %v1044
        %v1046 = vadd.f32 %v1045, 0.014752088
        %v1047 = vmul.f32 %v1031, %v1046
        %v1048 = vadd.f32 %v1047, 0.112945676
        %v1049 = vmul.f32 %v1031, %v1048
        %v1050 = vadd.f32 %v1049, 0.4994258
        %v1051 = vmul.f32 %v1031, %v1050
        %v1052 = vadd.f32 %v1051, 1.0
        %v1053 = vrcp.pop %v1052
        %v1054 = vmul.f32 %v1052, %v1053
        %v1055 = vsub.f32 1.0, %v1054
        %v1056 = vmul.f32 %v1053, %v1055
        %v1057 = vadd.f32 %v1053, %v1056
        %vm1058 = vweird.f32 %v1052
        %vm1059 = vweird.f32 %v1053
        %vm1060 = vmor %vm1058, %vm1059
        %v1061 = vsel %vm1060, %v1053, %v1057
        %v1062 = vand.u32 2147483647, %v1052
        %vm1063 = vcmp.eq.f32.partialorder %v1062, 8.507059e+37
        %v1064 = vand.u32 %v1052, 2147483648
        %v1065 = vor.u32 1.1754944e-38, %v1064
        %v1066 = vsel %vm1063, %v1065, %v1061
        %v1067 = vmul.f32 %v1042, %v1066
        %v1068 = vmin.f32 %v1067, 1.0
        %v1069 = vmax.f32 %v1068, -1.0
        %v1070 = vmul.f32 %v609, %v609
        %v1071 = vmin.f32 16.0, %v1070
        %v1072 = vmul.f32 %v1071, 2.1237322e-06
        %v1073 = vadd.f32 %v1072, 0.00028619796
        %v1074 = vmul.f32 %v1071, %v1073
        %v1075 = vadd.f32 %v1074, 0.0036580483
        %v1076 = vmul.f32 %v1071, %v1075
        %v1077 = vadd.f32 %v1076, 0.05243302
        %v1078 = vmul.f32 %v1071, %v1077
        %v1079 = vadd.f32 %v1078, 0.18741608
        %v1080 = vmul.f32 %v1071, %v1079
        %v1081 = vadd.f32 %v1080, 1.1283791
        %v1082 = vmul.f32 %v609, %v1081
        %v1083 = vmul.f32 %v1071, 3.8918573e-05
        %v1084 = vadd.f32 %v1083, 0.001143296
        %v1085 = vmul.f32 %v1071, %v1084
        %v1086 = vadd.f32 %v1085, 0.014752088
        %v1087 = vmul.f32 %v1071, %v1086
        %v1088 = vadd.f32 %v1087, 0.112945676
        %v1089 = vmul.f32 %v1071, %v1088
        %v1090 = vadd.f32 %v1089, 0.4994258
        %v1091 = vmul.f32 %v1071, %v1090
        %v1092 = vadd.f32 %v1091, 1.0
        %v1093 = vrcp.pop %v1092
        %v1094 = vmul.f32 %v1092, %v1093
        %v1095 = vsub.f32 1.0, %v1094
        %v1096 = vmul.f32 %v1093, %v1095
        %v1097 = vadd.f32 %v1093, %v1096
        %vm1098 = vweird.f32 %v1092
        %vm1099 = vweird.f32 %v1093
        %vm1100 = vmor %vm1098, %vm1099
        %v1101 = vsel %vm1100, %v1093, %v1097
        %v1102 = vand.u32 2147483647, %v1092
        %vm1103 = vcmp.eq.f32.partialorder %v1102, 8.507059e+37
        %v1104 = vand.u32 %v1092, 2147483648
        %v1105 = vor.u32 1.1754944e-38, %v1104
        %v1106 = vsel %vm1103, %v1105, %v1101
        %v1107 = vmul.f32 %v1082, %v1106
        %v1108 = vmin.f32 %v1107, 1.0
        %v1109 = vmax.f32 %v1108, -1.0
        %v1110 = vmul.f32 %v610, %v610
        %v1111 = vmin.f32 16.0, %v1110
        %v1112 = vmul.f32 %v1111, 2.1237322e-06
        %v1113 = vadd.f32 %v1112, 0.00028619796
        %v1114 = vmul.f32 %v1111, %v1113
        %v1115 = vadd.f32 %v1114, 0.0036580483
        %v1116 = vmul.f32 %v1111, %v1115
        %v1117 = vadd.f32 %v1116, 0.05243302
        %v1118 = vmul.f32 %v1111, %v1117
        %v1119 = vadd.f32 %v1118, 0.18741608
        %v1120 = vmul.f32 %v1111, %v1119
        %v1121 = vadd.f32 %v1120, 1.1283791
        %v1122 = vmul.f32 %v610, %v1121
        %v1123 = vmul.f32 %v1111, 3.8918573e-05
        %v1124 = vadd.f32 %v1123, 0.001143296
        %v1125 = vmul.f32 %v1111, %v1124
        %v1126 = vadd.f32 %v1125, 0.014752088
        %v1127 = vmul.f32 %v1111, %v1126
        %v1128 = vadd.f32 %v1127, 0.112945676
        %v1129 = vmul.f32 %v1111, %v1128
        %v1130 = vadd.f32 %v1129, 0.4994258
        %v1131 = vmul.f32 %v1111, %v1130
        %v1132 = vadd.f32 %v1131, 1.0
        %v1133 = vrcp.pop %v1132
        %v1134 = vmul.f32 %v1132, %v1133
        %v1135 = vsub.f32 1.0, %v1134
        %v1136 = vmul.f32 %v1133, %v1135
        %v1137 = vadd.f32 %v1133, %v1136
        %vm1138 = vweird.f32 %v1132
        %vm1139 = vweird.f32 %v1133
        %vm1140 = vmor %vm1138, %vm1139
        %v1141 = vsel %vm1140, %v1133, %v1137
        %v1142 = vand.u32 2147483647, %v1132
        %vm1143 = vcmp.eq.f32.partialorder %v1142, 8.507059e+37
        %v1144 = vand.u32 %v1132, 2147483648
        %v1145 = vor.u32 1.1754944e-38, %v1144
        %v1146 = vsel %vm1143, %v1145, %v1141
        %v1147 = vmul.f32 %v1122, %v1146
        %v1148 = vmin.f32 %v1147, 1.0
        %v1149 = vmax.f32 %v1148, -1.0
        %v1150 = vmul.f32 %v611, %v611
        %v1151 = vmin.f32 16.0, %v1150
        %v1152 = vmul.f32 %v1151, 2.1237322e-06
        %v1153 = vadd.f32 %v1152, 0.00028619796
        %v1154 = vmul.f32 %v1151, %v1153
        %v1155 = vadd.f32 %v1154, 0.0036580483
        %v1156 = vmul.f32 %v1151, %v1155
        %v1157 = vadd.f32 %v1156, 0.05243302
        %v1158 = vmul.f32 %v1151, %v1157
        %v1159 = vadd.f32 %v1158, 0.18741608
        %v1160 = vmul.f32 %v1151, %v1159
        %v1161 = vadd.f32 %v1160, 1.1283791
        %v1162 = vmul.f32 %v611, %v1161
        %v1163 = vmul.f32 %v1151, 3.8918573e-05
        %v1164 = vadd.f32 %v1163, 0.001143296
        %v1165 = vmul.f32 %v1151, %v1164
        %v1166 = vadd.f32 %v1165, 0.014752088
        %v1167 = vmul.f32 %v1151, %v1166
        %v1168 = vadd.f32 %v1167, 0.112945676
        %v1169 = vmul.f32 %v1151, %v1168
        %v1170 = vadd.f32 %v1169, 0.4994258
        %v1171 = vmul.f32 %v1151, %v1170
        %v1172 = vadd.f32 %v1171, 1.0
        %v1173 = vrcp.pop %v1172
        %v1174 = vmul.f32 %v1172, %v1173
        %v1175 = vsub.f32 1.0, %v1174
        %v1176 = vmul.f32 %v1173, %v1175
        %v1177 = vadd.f32 %v1173, %v1176
        %vm1178 = vweird.f32 %v1172
        %vm1179 = vweird.f32 %v1173
        %vm1180 = vmor %vm1178, %vm1179
        %v1181 = vsel %vm1180, %v1173, %v1177
        %v1182 = vand.u32 2147483647, %v1172
        %vm1183 = vcmp.eq.f32.partialorder %v1182, 8.507059e+37
        %v1184 = vand.u32 %v1172, 2147483648
        %v1185 = vor.u32 1.1754944e-38, %v1184
        %v1186 = vsel %vm1183, %v1185, %v1181
        %v1187 = vmul.f32 %v1162, %v1186
        %v1188 = vmin.f32 %v1187, 1.0
        %v1189 = vmax.f32 %v1188, -1.0
        %v1190 = vmul.f32 %v612, %v612
        %v1191 = vmin.f32 16.0, %v1190
        %v1192 = vmul.f32 %v1191, 2.1237322e-06
        %v1193 = vadd.f32 %v1192, 0.00028619796
        %v1194 = vmul.f32 %v1191, %v1193
        %v1195 = vadd.f32 %v1194, 0.0036580483
        %v1196 = vmul.f32 %v1191, %v1195
        %v1197 = vadd.f32 %v1196, 0.05243302
        %v1198 = vmul.f32 %v1191, %v1197
        %v1199 = vadd.f32 %v1198, 0.18741608
        %v1200 = vmul.f32 %v1191, %v1199
        %v1201 = vadd.f32 %v1200, 1.1283791
        %v1202 = vmul.f32 %v612, %v1201
        %v1203 = vmul.f32 %v1191, 3.8918573e-05
        %v1204 = vadd.f32 %v1203, 0.001143296
        %v1205 = vmul.f32 %v1191, %v1204
        %v1206 = vadd.f32 %v1205, 0.014752088
        %v1207 = vmul.f32 %v1191, %v1206
        %v1208 = vadd.f32 %v1207, 0.112945676
        %v1209 = vmul.f32 %v1191, %v1208
        %v1210 = vadd.f32 %v1209, 0.4994258
        %v1211 = vmul.f32 %v1191, %v1210
        %v1212 = vadd.f32 %v1211, 1.0
        %v1213 = vrcp.pop %v1212
        %v1214 = vmul.f32 %v1212, %v1213
        %v1215 = vsub.f32 1.0, %v1214
        %v1216 = vmul.f32 %v1213, %v1215
        %v1217 = vadd.f32 %v1213, %v1216
        %vm1218 = vweird.f32 %v1212
        %vm1219 = vweird.f32 %v1213
        %vm1220 = vmor %vm1218, %vm1219
        %v1221 = vsel %vm1220, %v1213, %v1217
        %v1222 = vand.u32 2147483647, %v1212
        %vm1223 = vcmp.eq.f32.partialorder %v1222, 8.507059e+37
        %v1224 = vand.u32 %v1212, 2147483648
        %v1225 = vor.u32 1.1754944e-38, %v1224
        %v1226 = vsel %vm1223, %v1225, %v1221
        %v1227 = vmul.f32 %v1202, %v1226
        %v1228 = vmin.f32 %v1227, 1.0
        %v1229 = vmax.f32 %v1228, -1.0
        %v1230 = vmul.f32 %v613, %v613
        %v1231 = vmin.f32 16.0, %v1230
        %v1232 = vmul.f32 %v1231, 2.1237322e-06
        %v1233 = vadd.f32 %v1232, 0.00028619796
        %v1234 = vmul.f32 %v1231, %v1233
        %v1235 = vadd.f32 %v1234, 0.0036580483
        %v1236 = vmul.f32 %v1231, %v1235
        %v1237 = vadd.f32 %v1236, 0.05243302
        %v1238 = vmul.f32 %v1231, %v1237
        %v1239 = vadd.f32 %v1238, 0.18741608
        %v1240 = vmul.f32 %v1231, %v1239
        %v1241 = vadd.f32 %v1240, 1.1283791
        %v1242 = vmul.f32 %v613, %v1241
        %v1243 = vmul.f32 %v1231, 3.8918573e-05
        %v1244 = vadd.f32 %v1243, 0.001143296
        %v1245 = vmul.f32 %v1231, %v1244
        %v1246 = vadd.f32 %v1245, 0.014752088
        %v1247 = vmul.f32 %v1231, %v1246
        %v1248 = vadd.f32 %v1247, 0.112945676
        %v1249 = vmul.f32 %v1231, %v1248
        %v1250 = vadd.f32 %v1249, 0.4994258
        %v1251 = vmul.f32 %v1231, %v1250
        %v1252 = vadd.f32 %v1251, 1.0
        %v1253 = vrcp.pop %v1252
        %v1254 = vmul.f32 %v1252, %v1253
        %v1255 = vsub.f32 1.0, %v1254
        %v1256 = vmul.f32 %v1253, %v1255
        %v1257 = vadd.f32 %v1253, %v1256
        %vm1258 = vweird.f32 %v1252
        %vm1259 = vweird.f32 %v1253
        %vm1260 = vmor %vm1258, %vm1259
        %v1261 = vsel %vm1260, %v1253, %v1257
        %v1262 = vand.u32 2147483647, %v1252
        %vm1263 = vcmp.eq.f32.partialorder %v1262, 8.507059e+37
        %v1264 = vand.u32 %v1252, 2147483648
        %v1265 = vor.u32 1.1754944e-38, %v1264
        %v1266 = vsel %vm1263, %v1265, %v1261
        %v1267 = vmul.f32 %v1242, %v1266
        %v1268 = vmin.f32 %v1267, 1.0
        %v1269 = vmax.f32 %v1268, -1.0
        %v1270 = vmul.f32 %v614, %v614
        %v1271 = vmin.f32 16.0, %v1270
        %v1272 = vmul.f32 %v1271, 2.1237322e-06
        %v1273 = vadd.f32 %v1272, 0.00028619796
        %v1274 = vmul.f32 %v1271, %v1273
        %v1275 = vadd.f32 %v1274, 0.0036580483
        %v1276 = vmul.f32 %v1271, %v1275
        %v1277 = vadd.f32 %v1276, 0.05243302
        %v1278 = vmul.f32 %v1271, %v1277
        %v1279 = vadd.f32 %v1278, 0.18741608
        %v1280 = vmul.f32 %v1271, %v1279
        %v1281 = vadd.f32 %v1280, 1.1283791
        %v1282 = vmul.f32 %v614, %v1281
        %v1283 = vmul.f32 %v1271, 3.8918573e-05
        %v1284 = vadd.f32 %v1283, 0.001143296
        %v1285 = vmul.f32 %v1271, %v1284
        %v1286 = vadd.f32 %v1285, 0.014752088
        %v1287 = vmul.f32 %v1271, %v1286
        %v1288 = vadd.f32 %v1287, 0.112945676
        %v1289 = vmul.f32 %v1271, %v1288
        %v1290 = vadd.f32 %v1289, 0.4994258
        %v1291 = vmul.f32 %v1271, %v1290
        %v1292 = vadd.f32 %v1291, 1.0
        %v1293 = vrcp.pop %v1292
        %v1294 = vmul.f32 %v1292, %v1293
        %v1295 = vsub.f32 1.0, %v1294
        %v1296 = vmul.f32 %v1293, %v1295
        %v1297 = vadd.f32 %v1293, %v1296
        %vm1298 = vweird.f32 %v1292
        %vm1299 = vweird.f32 %v1293
        %vm1300 = vmor %vm1298, %vm1299
        %v1301 = vsel %vm1300, %v1293, %v1297
        %v1302 = vand.u32 2147483647, %v1292
        %vm1303 = vcmp.eq.f32.partialorder %v1302, 8.507059e+37
        %v1304 = vand.u32 %v1292, 2147483648
        %v1305 = vor.u32 1.1754944e-38, %v1304
        %v1306 = vsel %vm1303, %v1305, %v1301
        %v1307 = vmul.f32 %v1282, %v1306
        %v1308 = vmin.f32 %v1307, 1.0
        %v1309 = vmax.f32 %v1308, -1.0
        %v1310 = vmul.f32 %v615, %v615
        %v1311 = vmin.f32 16.0, %v1310
        %v1312 = vmul.f32 %v1311, 2.1237322e-06
        %v1313 = vadd.f32 %v1312, 0.00028619796
        %v1314 = vmul.f32 %v1311, %v1313
        %v1315 = vadd.f32 %v1314, 0.0036580483
        %v1316 = vmul.f32 %v1311, %v1315
        %v1317 = vadd.f32 %v1316, 0.05243302
        %v1318 = vmul.f32 %v1311, %v1317
        %v1319 = vadd.f32 %v1318, 0.18741608
        %v1320 = vmul.f32 %v1311, %v1319
        %v1321 = vadd.f32 %v1320, 1.1283791
        %v1322 = vmul.f32 %v615, %v1321
        %v1323 = vmul.f32 %v1311, 3.8918573e-05
        %v1324 = vadd.f32 %v1323, 0.001143296
        %v1325 = vmul.f32 %v1311, %v1324
        %v1326 = vadd.f32 %v1325, 0.014752088
        %v1327 = vmul.f32 %v1311, %v1326
        %v1328 = vadd.f32 %v1327, 0.112945676
        %v1329 = vmul.f32 %v1311, %v1328
        %v1330 = vadd.f32 %v1329, 0.4994258
        %v1331 = vmul.f32 %v1311, %v1330
        %v1332 = vadd.f32 %v1331, 1.0
        %v1333 = vrcp.pop %v1332
        %v1334 = vmul.f32 %v1332, %v1333
        %v1335 = vsub.f32 1.0, %v1334
        %v1336 = vmul.f32 %v1333, %v1335
        %v1337 = vadd.f32 %v1333, %v1336
        %vm1338 = vweird.f32 %v1332
        %vm1339 = vweird.f32 %v1333
        %vm1340 = vmor %vm1338, %vm1339
        %v1341 = vsel %vm1340, %v1333, %v1337
        %v1342 = vand.u32 2147483647, %v1332
        %vm1343 = vcmp.eq.f32.partialorder %v1342, 8.507059e+37
        %v1344 = vand.u32 %v1332, 2147483648
        %v1345 = vor.u32 1.1754944e-38, %v1344
        %v1346 = vsel %vm1343, %v1345, %v1341
        %v1347 = vmul.f32 %v1322, %v1346
        %v1348 = vmin.f32 %v1347, 1.0
        %v1349 = vmax.f32 %v1348, -1.0
        %v1350 = vmul.f32 %v616, %v616
        %v1351 = vmin.f32 16.0, %v1350
        %v1352 = vmul.f32 %v1351, 2.1237322e-06
        %v1353 = vadd.f32 %v1352, 0.00028619796
        %v1354 = vmul.f32 %v1351, %v1353
        %v1355 = vadd.f32 %v1354, 0.0036580483
        %v1356 = vmul.f32 %v1351, %v1355
        %v1357 = vadd.f32 %v1356, 0.05243302
        %v1358 = vmul.f32 %v1351, %v1357
        %v1359 = vadd.f32 %v1358, 0.18741608
        %v1360 = vmul.f32 %v1351, %v1359
        %v1361 = vadd.f32 %v1360, 1.1283791
        %v1362 = vmul.f32 %v616, %v1361
        %v1363 = vmul.f32 %v1351, 3.8918573e-05
        %v1364 = vadd.f32 %v1363, 0.001143296
        %v1365 = vmul.f32 %v1351, %v1364
        %v1366 = vadd.f32 %v1365, 0.014752088
        %v1367 = vmul.f32 %v1351, %v1366
        %v1368 = vadd.f32 %v1367, 0.112945676
        %v1369 = vmul.f32 %v1351, %v1368
        %v1370 = vadd.f32 %v1369, 0.4994258
        %v1371 = vmul.f32 %v1351, %v1370
        %v1372 = vadd.f32 %v1371, 1.0
        %v1373 = vrcp.pop %v1372
        %v1374 = vmul.f32 %v1372, %v1373
        %v1375 = vsub.f32 1.0, %v1374
        %v1376 = vmul.f32 %v1373, %v1375
        %v1377 = vadd.f32 %v1373, %v1376
        %vm1378 = vweird.f32 %v1372
        %vm1379 = vweird.f32 %v1373
        %vm1380 = vmor %vm1378, %vm1379
        %v1381 = vsel %vm1380, %v1373, %v1377
        %v1382 = vand.u32 2147483647, %v1372
        %vm1383 = vcmp.eq.f32.partialorder %v1382, 8.507059e+37
        %v1384 = vand.u32 %v1372, 2147483648
        %v1385 = vor.u32 1.1754944e-38, %v1384
        %v1386 = vsel %vm1383, %v1385, %v1381
        %v1387 = vmul.f32 %v1362, %v1386
        %v1388 = vmin.f32 %v1387, 1.0
        %v1389 = vmax.f32 %v1388, -1.0
        %v1390 = vmul.f32 %v617, %v617
        %v1391 = vmin.f32 16.0, %v1390
        %v1392 = vmul.f32 %v1391, 2.1237322e-06
        %v1393 = vadd.f32 %v1392, 0.00028619796
        %v1394 = vmul.f32 %v1391, %v1393
        %v1395 = vadd.f32 %v1394, 0.0036580483
        %v1396 = vmul.f32 %v1391, %v1395
        %v1397 = vadd.f32 %v1396, 0.05243302
        %v1398 = vmul.f32 %v1391, %v1397
        %v1399 = vadd.f32 %v1398, 0.18741608
        %v1400 = vmul.f32 %v1391, %v1399
        %v1401 = vadd.f32 %v1400, 1.1283791
        %v1402 = vmul.f32 %v617, %v1401
        %v1403 = vmul.f32 %v1391, 3.8918573e-05
        %v1404 = vadd.f32 %v1403, 0.001143296
        %v1405 = vmul.f32 %v1391, %v1404
        %v1406 = vadd.f32 %v1405, 0.014752088
        %v1407 = vmul.f32 %v1391, %v1406
        %v1408 = vadd.f32 %v1407, 0.112945676
        %v1409 = vmul.f32 %v1391, %v1408
        %v1410 = vadd.f32 %v1409, 0.4994258
        %v1411 = vmul.f32 %v1391, %v1410
        %v1412 = vadd.f32 %v1411, 1.0
        %v1413 = vrcp.pop %v1412
        %v1414 = vmul.f32 %v1412, %v1413
        %v1415 = vsub.f32 1.0, %v1414
        %v1416 = vmul.f32 %v1413, %v1415
        %v1417 = vadd.f32 %v1413, %v1416
        %vm1418 = vweird.f32 %v1412
        %vm1419 = vweird.f32 %v1413
        %vm1420 = vmor %vm1418, %vm1419
        %v1421 = vsel %vm1420, %v1413, %v1417
        %v1422 = vand.u32 2147483647, %v1412
        %vm1423 = vcmp.eq.f32.partialorder %v1422, 8.507059e+37
        %v1424 = vand.u32 %v1412, 2147483648
        %v1425 = vor.u32 1.1754944e-38, %v1424
        %v1426 = vsel %vm1423, %v1425, %v1421
        %v1427 = vmul.f32 %v1402, %v1426
        %v1428 = vmin.f32 %v1427, 1.0
        %v1429 = vmax.f32 %v1428, -1.0
        %v1430 = vmul.f32 %v618, %v618
        %v1431 = vmin.f32 16.0, %v1430
        %v1432 = vmul.f32 %v1431, 2.1237322e-06
        %v1433 = vadd.f32 %v1432, 0.00028619796
        %v1434 = vmul.f32 %v1431, %v1433
        %v1435 = vadd.f32 %v1434, 0.0036580483
        %v1436 = vmul.f32 %v1431, %v1435
        %v1437 = vadd.f32 %v1436, 0.05243302
        %v1438 = vmul.f32 %v1431, %v1437
        %v1439 = vadd.f32 %v1438, 0.18741608
        %v1440 = vmul.f32 %v1431, %v1439
        %v1441 = vadd.f32 %v1440, 1.1283791
        %v1442 = vmul.f32 %v618, %v1441
        %v1443 = vmul.f32 %v1431, 3.8918573e-05
        %v1444 = vadd.f32 %v1443, 0.001143296
        %v1445 = vmul.f32 %v1431, %v1444
        %v1446 = vadd.f32 %v1445, 0.014752088
        %v1447 = vmul.f32 %v1431, %v1446
        %v1448 = vadd.f32 %v1447, 0.112945676
        %v1449 = vmul.f32 %v1431, %v1448
        %v1450 = vadd.f32 %v1449, 0.4994258
        %v1451 = vmul.f32 %v1431, %v1450
        %v1452 = vadd.f32 %v1451, 1.0
        %v1453 = vrcp.pop %v1452
        %v1454 = vmul.f32 %v1452, %v1453
        %v1455 = vsub.f32 1.0, %v1454
        %v1456 = vmul.f32 %v1453, %v1455
        %v1457 = vadd.f32 %v1453, %v1456
        %vm1458 = vweird.f32 %v1452
        %vm1459 = vweird.f32 %v1453
        %vm1460 = vmor %vm1458, %vm1459
        %v1461 = vsel %vm1460, %v1453, %v1457
        %v1462 = vand.u32 2147483647, %v1452
        %vm1463 = vcmp.eq.f32.partialorder %v1462, 8.507059e+37
        %v1464 = vand.u32 %v1452, 2147483648
        %v1465 = vor.u32 1.1754944e-38, %v1464
        %v1466 = vsel %vm1463, %v1465, %v1461
        %v1467 = vmul.f32 %v1442, %v1466
        %v1468 = vmin.f32 %v1467, 1.0
        %v1469 = vmax.f32 %v1468, -1.0
        %v1470 = vmul.f32 %v619, %v619
        %v1471 = vmin.f32 16.0, %v1470
        %v1472 = vmul.f32 %v1471, 2.1237322e-06
        %v1473 = vadd.f32 %v1472, 0.00028619796
        %v1474 = vmul.f32 %v1471, %v1473
        %v1475 = vadd.f32 %v1474, 0.0036580483
        %v1476 = vmul.f32 %v1471, %v1475
        %v1477 = vadd.f32 %v1476, 0.05243302
        %v1478 = vmul.f32 %v1471, %v1477
        %v1479 = vadd.f32 %v1478, 0.18741608
        %v1480 = vmul.f32 %v1471, %v1479
        %v1481 = vadd.f32 %v1480, 1.1283791
        %v1482 = vmul.f32 %v619, %v1481
        %v1483 = vmul.f32 %v1471, 3.8918573e-05
        %v1484 = vadd.f32 %v1483, 0.001143296
        %v1485 = vmul.f32 %v1471, %v1484
        %v1486 = vadd.f32 %v1485, 0.014752088
        %v1487 = vmul.f32 %v1471, %v1486
        %v1488 = vadd.f32 %v1487, 0.112945676
        %v1489 = vmul.f32 %v1471, %v1488
        %v1490 = vadd.f32 %v1489, 0.4994258
        %v1491 = vmul.f32 %v1471, %v1490
        %v1492 = vadd.f32 %v1491, 1.0
        %v1493 = vrcp.pop %v1492
        %v1494 = vmul.f32 %v1492, %v1493
        %v1495 = vsub.f32 1.0, %v1494
        %v1496 = vmul.f32 %v1493, %v1495
        %v1497 = vadd.f32 %v1493, %v1496
        %vm1498 = vweird.f32 %v1492
        %vm1499 = vweird.f32 %v1493
        %vm1500 = vmor %vm1498, %vm1499
        %v1501 = vsel %vm1500, %v1493, %v1497
        %v1502 = vand.u32 2147483647, %v1492
        %vm1503 = vcmp.eq.f32.partialorder %v1502, 8.507059e+37
        %v1504 = vand.u32 %v1492, 2147483648
        %v1505 = vor.u32 1.1754944e-38, %v1504
        %v1506 = vsel %vm1503, %v1505, %v1501
        %v1507 = vmul.f32 %v1482, %v1506
        %v1508 = vmin.f32 %v1507, 1.0
        %v1509 = vmax.f32 %v1508, -1.0
        %v1510 = vmul.f32 %v620, %v620
        %v1511 = vmin.f32 16.0, %v1510
        %v1512 = vmul.f32 %v1511, 2.1237322e-06
        %v1513 = vadd.f32 %v1512, 0.00028619796
        %v1514 = vmul.f32 %v1511, %v1513
        %v1515 = vadd.f32 %v1514, 0.0036580483
        %v1516 = vmul.f32 %v1511, %v1515
        %v1517 = vadd.f32 %v1516, 0.05243302
        %v1518 = vmul.f32 %v1511, %v1517
        %v1519 = vadd.f32 %v1518, 0.18741608
        %v1520 = vmul.f32 %v1511, %v1519
        %v1521 = vadd.f32 %v1520, 1.1283791
        %v1522 = vmul.f32 %v620, %v1521
        %v1523 = vmul.f32 %v1511, 3.8918573e-05
        %v1524 = vadd.f32 %v1523, 0.001143296
        %v1525 = vmul.f32 %v1511, %v1524
        %v1526 = vadd.f32 %v1525, 0.014752088
        %v1527 = vmul.f32 %v1511, %v1526
        %v1528 = vadd.f32 %v1527, 0.112945676
        %v1529 = vmul.f32 %v1511, %v1528
        %v1530 = vadd.f32 %v1529, 0.4994258
        %v1531 = vmul.f32 %v1511, %v1530
        %v1532 = vadd.f32 %v1531, 1.0
        %v1533 = vrcp.pop %v1532
        %v1534 = vmul.f32 %v1532, %v1533
        %v1535 = vsub.f32 1.0, %v1534
        %v1536 = vmul.f32 %v1533, %v1535
        %v1537 = vadd.f32 %v1533, %v1536
        %vm1538 = vweird.f32 %v1532
        %vm1539 = vweird.f32 %v1533
        %vm1540 = vmor %vm1538, %vm1539
        %v1541 = vsel %vm1540, %v1533, %v1537
        %v1542 = vand.u32 2147483647, %v1532
        %vm1543 = vcmp.eq.f32.partialorder %v1542, 8.507059e+37
        %v1544 = vand.u32 %v1532, 2147483648
        %v1545 = vor.u32 1.1754944e-38, %v1544
        %v1546 = vsel %vm1543, %v1545, %v1541
        %v1547 = vmul.f32 %v1522, %v1546
        %v1548 = vmin.f32 %v1547, 1.0
        %v1549 = vmax.f32 %v1548, -1.0
        %v1550 = vmul.f32 %v621, %v621
        %v1551 = vmin.f32 16.0, %v1550
        %v1552 = vmul.f32 %v1551, 2.1237322e-06
        %v1553 = vadd.f32 %v1552, 0.00028619796
        %v1554 = vmul.f32 %v1551, %v1553
        %v1555 = vadd.f32 %v1554, 0.0036580483
        %v1556 = vmul.f32 %v1551, %v1555
        %v1557 = vadd.f32 %v1556, 0.05243302
        %v1558 = vmul.f32 %v1551, %v1557
        %v1559 = vadd.f32 %v1558, 0.18741608
        %v1560 = vmul.f32 %v1551, %v1559
        %v1561 = vadd.f32 %v1560, 1.1283791
        %v1562 = vmul.f32 %v621, %v1561
        %v1563 = vmul.f32 %v1551, 3.8918573e-05
        %v1564 = vadd.f32 %v1563, 0.001143296
        %v1565 = vmul.f32 %v1551, %v1564
        %v1566 = vadd.f32 %v1565, 0.014752088
        %v1567 = vmul.f32 %v1551, %v1566
        %v1568 = vadd.f32 %v1567, 0.112945676
        %v1569 = vmul.f32 %v1551, %v1568
        %v1570 = vadd.f32 %v1569, 0.4994258
        %v1571 = vmul.f32 %v1551, %v1570
        %v1572 = vadd.f32 %v1571, 1.0
        %v1573 = vrcp.pop %v1572
        %v1574 = vmul.f32 %v1572, %v1573
        %v1575 = vsub.f32 1.0, %v1574
        %v1576 = vmul.f32 %v1573, %v1575
        %v1577 = vadd.f32 %v1573, %v1576
        %vm1578 = vweird.f32 %v1572
        %vm1579 = vweird.f32 %v1573
        %vm1580 = vmor %vm1578, %vm1579
        %v1581 = vsel %vm1580, %v1573, %v1577
        %v1582 = vand.u32 2147483647, %v1572
        %vm1583 = vcmp.eq.f32.partialorder %v1582, 8.507059e+37
        %v1584 = vand.u32 %v1572, 2147483648
        %v1585 = vor.u32 1.1754944e-38, %v1584
        %v1586 = vsel %vm1583, %v1585, %v1581
        %v1587 = vmul.f32 %v1562, %v1586
        %v1588 = vmin.f32 %v1587, 1.0
        %v1589 = vmax.f32 %v1588, -1.0
        %v1590 = vmul.f32 %v622, %v622
        %v1591 = vmin.f32 16.0, %v1590
        %v1592 = vmul.f32 %v1591, 2.1237322e-06
        %v1593 = vadd.f32 %v1592, 0.00028619796
        %v1594 = vmul.f32 %v1591, %v1593
        %v1595 = vadd.f32 %v1594, 0.0036580483
        %v1596 = vmul.f32 %v1591, %v1595
        %v1597 = vadd.f32 %v1596, 0.05243302
        %v1598 = vmul.f32 %v1591, %v1597
        %v1599 = vadd.f32 %v1598, 0.18741608
        %v1600 = vmul.f32 %v1591, %v1599
        %v1601 = vadd.f32 %v1600, 1.1283791
        %v1602 = vmul.f32 %v622, %v1601
        %v1603 = vmul.f32 %v1591, 3.8918573e-05
        %v1604 = vadd.f32 %v1603, 0.001143296
        %v1605 = vmul.f32 %v1591, %v1604
        %v1606 = vadd.f32 %v1605, 0.014752088
        %v1607 = vmul.f32 %v1591, %v1606
        %v1608 = vadd.f32 %v1607, 0.112945676
        %v1609 = vmul.f32 %v1591, %v1608
        %v1610 = vadd.f32 %v1609, 0.4994258
        %v1611 = vmul.f32 %v1591, %v1610
        %v1612 = vadd.f32 %v1611, 1.0
        %v1613 = vrcp.pop %v1612
        %v1614 = vmul.f32 %v1612, %v1613
        %v1615 = vsub.f32 1.0, %v1614
        %v1616 = vmul.f32 %v1613, %v1615
        %v1617 = vadd.f32 %v1613, %v1616
        %vm1618 = vweird.f32 %v1612
        %vm1619 = vweird.f32 %v1613
        %vm1620 = vmor %vm1618, %vm1619
        %v1621 = vsel %vm1620, %v1613, %v1617
        %v1622 = vand.u32 2147483647, %v1612
        %vm1623 = vcmp.eq.f32.partialorder %v1622, 8.507059e+37
        %v1624 = vand.u32 %v1612, 2147483648
        %v1625 = vor.u32 1.1754944e-38, %v1624
        %v1626 = vsel %vm1623, %v1625, %v1621
        %v1627 = vmul.f32 %v1602, %v1626
        %v1628 = vmin.f32 %v1627, 1.0
        %v1629 = vmax.f32 %v1628, -1.0
        %v1630 = vmul.f32 %v623, %v623
        %v1631 = vmin.f32 16.0, %v1630
        %v1632 = vmul.f32 %v1631, 2.1237322e-06
        %v1633 = vadd.f32 %v1632, 0.00028619796
        %v1634 = vmul.f32 %v1631, %v1633
        %v1635 = vadd.f32 %v1634, 0.0036580483
        %v1636 = vmul.f32 %v1631, %v1635
        %v1637 = vadd.f32 %v1636, 0.05243302
        %v1638 = vmul.f32 %v1631, %v1637
        %v1639 = vadd.f32 %v1638, 0.18741608
        %v1640 = vmul.f32 %v1631, %v1639
        %v1641 = vadd.f32 %v1640, 1.1283791
        %v1642 = vmul.f32 %v623, %v1641
        %v1643 = vmul.f32 %v1631, 3.8918573e-05
        %v1644 = vadd.f32 %v1643, 0.001143296
        %v1645 = vmul.f32 %v1631, %v1644
        %v1646 = vadd.f32 %v1645, 0.014752088
        %v1647 = vmul.f32 %v1631, %v1646
        %v1648 = vadd.f32 %v1647, 0.112945676
        %v1649 = vmul.f32 %v1631, %v1648
        %v1650 = vadd.f32 %v1649, 0.4994258
        %v1651 = vmul.f32 %v1631, %v1650
        %v1652 = vadd.f32 %v1651, 1.0
        %v1653 = vrcp.pop %v1652
        %v1654 = vmul.f32 %v1652, %v1653
        %v1655 = vsub.f32 1.0, %v1654
        %v1656 = vmul.f32 %v1653, %v1655
        %v1657 = vadd.f32 %v1653, %v1656
        %vm1658 = vweird.f32 %v1652
        %vm1659 = vweird.f32 %v1653
        %vm1660 = vmor %vm1658, %vm1659
        %v1661 = vsel %vm1660, %v1653, %v1657
        %v1662 = vand.u32 2147483647, %v1652
        %vm1663 = vcmp.eq.f32.partialorder %v1662, 8.507059e+37
        %v1664 = vand.u32 %v1652, 2147483648
        %v1665 = vor.u32 1.1754944e-38, %v1664
        %v1666 = vsel %vm1663, %v1665, %v1661
        %v1667 = vmul.f32 %v1642, %v1666
        %v1668 = vmin.f32 %v1667, 1.0
        %v1669 = vmax.f32 %v1668, -1.0
        %v1670 = vmul.f32 %v624, %v624
        %v1671 = vmin.f32 16.0, %v1670
        %v1672 = vmul.f32 %v1671, 2.1237322e-06
        %v1673 = vadd.f32 %v1672, 0.00028619796
        %v1674 = vmul.f32 %v1671, %v1673
        %v1675 = vadd.f32 %v1674, 0.0036580483
        %v1676 = vmul.f32 %v1671, %v1675
        %v1677 = vadd.f32 %v1676, 0.05243302
        %v1678 = vmul.f32 %v1671, %v1677
        %v1679 = vadd.f32 %v1678, 0.18741608
        %v1680 = vmul.f32 %v1671, %v1679
        %v1681 = vadd.f32 %v1680, 1.1283791
        %v1682 = vmul.f32 %v624, %v1681
        %v1683 = vmul.f32 %v1671, 3.8918573e-05
        %v1684 = vadd.f32 %v1683, 0.001143296
        %v1685 = vmul.f32 %v1671, %v1684
        %v1686 = vadd.f32 %v1685, 0.014752088
        %v1687 = vmul.f32 %v1671, %v1686
        %v1688 = vadd.f32 %v1687, 0.112945676
        %v1689 = vmul.f32 %v1671, %v1688
        %v1690 = vadd.f32 %v1689, 0.4994258
        %v1691 = vmul.f32 %v1671, %v1690
        %v1692 = vadd.f32 %v1691, 1.0
        %v1693 = vrcp.pop %v1692
        %v1694 = vmul.f32 %v1692, %v1693
        %v1695 = vsub.f32 1.0, %v1694
        %v1696 = vmul.f32 %v1693, %v1695
        %v1697 = vadd.f32 %v1693, %v1696
        %vm1698 = vweird.f32 %v1692
        %vm1699 = vweird.f32 %v1693
        %vm1700 = vmor %vm1698, %vm1699
        %v1701 = vsel %vm1700, %v1693, %v1697
        %v1702 = vand.u32 2147483647, %v1692
        %vm1703 = vcmp.eq.f32.partialorder %v1702, 8.507059e+37
        %v1704 = vand.u32 %v1692, 2147483648
        %v1705 = vor.u32 1.1754944e-38, %v1704
        %v1706 = vsel %vm1703, %v1705, %v1701
        %v1707 = vmul.f32 %v1682, %v1706
        %v1708 = vmin.f32 %v1707, 1.0
        %v1709 = vmax.f32 %v1708, -1.0
        %v1710 = vmul.f32 %v625, %v625
        %v1711 = vmin.f32 16.0, %v1710
        %v1712 = vmul.f32 %v1711, 2.1237322e-06
        %v1713 = vadd.f32 %v1712, 0.00028619796
        %v1714 = vmul.f32 %v1711, %v1713
        %v1715 = vadd.f32 %v1714, 0.0036580483
        %v1716 = vmul.f32 %v1711, %v1715
        %v1717 = vadd.f32 %v1716, 0.05243302
        %v1718 = vmul.f32 %v1711, %v1717
        %v1719 = vadd.f32 %v1718, 0.18741608
        %v1720 = vmul.f32 %v1711, %v1719
        %v1721 = vadd.f32 %v1720, 1.1283791
        %v1722 = vmul.f32 %v625, %v1721
        %v1723 = vmul.f32 %v1711, 3.8918573e-05
        %v1724 = vadd.f32 %v1723, 0.001143296
        %v1725 = vmul.f32 %v1711, %v1724
        %v1726 = vadd.f32 %v1725, 0.014752088
        %v1727 = vmul.f32 %v1711, %v1726
        %v1728 = vadd.f32 %v1727, 0.112945676
        %v1729 = vmul.f32 %v1711, %v1728
        %v1730 = vadd.f32 %v1729, 0.4994258
        %v1731 = vmul.f32 %v1711, %v1730
        %v1732 = vadd.f32 %v1731, 1.0
        %v1733 = vrcp.pop %v1732
        %v1734 = vmul.f32 %v1732, %v1733
        %v1735 = vsub.f32 1.0, %v1734
        %v1736 = vmul.f32 %v1733, %v1735
        %v1737 = vadd.f32 %v1733, %v1736
        %vm1738 = vweird.f32 %v1732
        %vm1739 = vweird.f32 %v1733
        %vm1740 = vmor %vm1738, %vm1739
        %v1741 = vsel %vm1740, %v1733, %v1737
        %v1742 = vand.u32 2147483647, %v1732
        %vm1743 = vcmp.eq.f32.partialorder %v1742, 8.507059e+37
        %v1744 = vand.u32 %v1732, 2147483648
        %v1745 = vor.u32 1.1754944e-38, %v1744
        %v1746 = vsel %vm1743, %v1745, %v1741
        %v1747 = vmul.f32 %v1722, %v1746
        %v1748 = vmin.f32 %v1747, 1.0
        %v1749 = vmax.f32 %v1748, -1.0
        %v1750 = vmul.f32 %v626, %v626
        %v1751 = vmin.f32 16.0, %v1750
        %v1752 = vmul.f32 %v1751, 2.1237322e-06
        %v1753 = vadd.f32 %v1752, 0.00028619796
        %v1754 = vmul.f32 %v1751, %v1753
        %v1755 = vadd.f32 %v1754, 0.0036580483
        %v1756 = vmul.f32 %v1751, %v1755
        %v1757 = vadd.f32 %v1756, 0.05243302
        %v1758 = vmul.f32 %v1751, %v1757
        %v1759 = vadd.f32 %v1758, 0.18741608
        %v1760 = vmul.f32 %v1751, %v1759
        %v1761 = vadd.f32 %v1760, 1.1283791
        %v1762 = vmul.f32 %v626, %v1761
        %v1763 = vmul.f32 %v1751, 3.8918573e-05
        %v1764 = vadd.f32 %v1763, 0.001143296
        %v1765 = vmul.f32 %v1751, %v1764
        %v1766 = vadd.f32 %v1765, 0.014752088
        %v1767 = vmul.f32 %v1751, %v1766
        %v1768 = vadd.f32 %v1767, 0.112945676
        %v1769 = vmul.f32 %v1751, %v1768
        %v1770 = vadd.f32 %v1769, 0.4994258
        %v1771 = vmul.f32 %v1751, %v1770
        %v1772 = vadd.f32 %v1771, 1.0
        %v1773 = vrcp.pop %v1772
        %v1774 = vmul.f32 %v1772, %v1773
        %v1775 = vsub.f32 1.0, %v1774
        %v1776 = vmul.f32 %v1773, %v1775
        %v1777 = vadd.f32 %v1773, %v1776
        %vm1778 = vweird.f32 %v1772
        %vm1779 = vweird.f32 %v1773
        %vm1780 = vmor %vm1778, %vm1779
        %v1781 = vsel %vm1780, %v1773, %v1777
        %v1782 = vand.u32 2147483647, %v1772
        %vm1783 = vcmp.eq.f32.partialorder %v1782, 8.507059e+37
        %v1784 = vand.u32 %v1772, 2147483648
        %v1785 = vor.u32 1.1754944e-38, %v1784
        %v1786 = vsel %vm1783, %v1785, %v1781
        %v1787 = vmul.f32 %v1762, %v1786
        %v1788 = vmin.f32 %v1787, 1.0
        %v1789 = vmax.f32 %v1788, -1.0
        %v1790 = vmul.f32 %v627, %v627
        %v1791 = vmin.f32 16.0, %v1790
        %v1792 = vmul.f32 %v1791, 2.1237322e-06
        %v1793 = vadd.f32 %v1792, 0.00028619796
        %v1794 = vmul.f32 %v1791, %v1793
        %v1795 = vadd.f32 %v1794, 0.0036580483
        %v1796 = vmul.f32 %v1791, %v1795
        %v1797 = vadd.f32 %v1796, 0.05243302
        %v1798 = vmul.f32 %v1791, %v1797
        %v1799 = vadd.f32 %v1798, 0.18741608
        %v1800 = vmul.f32 %v1791, %v1799
        %v1801 = vadd.f32 %v1800, 1.1283791
        %v1802 = vmul.f32 %v627, %v1801
        %v1803 = vmul.f32 %v1791, 3.8918573e-05
        %v1804 = vadd.f32 %v1803, 0.001143296
        %v1805 = vmul.f32 %v1791, %v1804
        %v1806 = vadd.f32 %v1805, 0.014752088
        %v1807 = vmul.f32 %v1791, %v1806
        %v1808 = vadd.f32 %v1807, 0.112945676
        %v1809 = vmul.f32 %v1791, %v1808
        %v1810 = vadd.f32 %v1809, 0.4994258
        %v1811 = vmul.f32 %v1791, %v1810
        %v1812 = vadd.f32 %v1811, 1.0
        %v1813 = vrcp.pop %v1812
        %v1814 = vmul.f32 %v1812, %v1813
        %v1815 = vsub.f32 1.0, %v1814
        %v1816 = vmul.f32 %v1813, %v1815
        %v1817 = vadd.f32 %v1813, %v1816
        %vm1818 = vweird.f32 %v1812
        %vm1819 = vweird.f32 %v1813
        %vm1820 = vmor %vm1818, %vm1819
        %v1821 = vsel %vm1820, %v1813, %v1817
        %v1822 = vand.u32 2147483647, %v1812
        %vm1823 = vcmp.eq.f32.partialorder %v1822, 8.507059e+37
        %v1824 = vand.u32 %v1812, 2147483648
        %v1825 = vor.u32 1.1754944e-38, %v1824
        %v1826 = vsel %vm1823, %v1825, %v1821
        %v1827 = vmul.f32 %v1802, %v1826
        %v1828 = vmin.f32 %v1827, 1.0
        %v1829 = vmax.f32 %v1828, -1.0
        %v1830 = vmul.f32 %v628, %v628
        %v1831 = vmin.f32 16.0, %v1830
        %v1832 = vmul.f32 %v1831, 2.1237322e-06
        %v1833 = vadd.f32 %v1832, 0.00028619796
        %v1834 = vmul.f32 %v1831, %v1833
        %v1835 = vadd.f32 %v1834, 0.0036580483
        %v1836 = vmul.f32 %v1831, %v1835
        %v1837 = vadd.f32 %v1836, 0.05243302
        %v1838 = vmul.f32 %v1831, %v1837
        %v1839 = vadd.f32 %v1838, 0.18741608
        %v1840 = vmul.f32 %v1831, %v1839
        %v1841 = vadd.f32 %v1840, 1.1283791
        %v1842 = vmul.f32 %v628, %v1841
        %v1843 = vmul.f32 %v1831, 3.8918573e-05
        %v1844 = vadd.f32 %v1843, 0.001143296
        %v1845 = vmul.f32 %v1831, %v1844
        %v1846 = vadd.f32 %v1845, 0.014752088
        %v1847 = vmul.f32 %v1831, %v1846
        %v1848 = vadd.f32 %v1847, 0.112945676
        %v1849 = vmul.f32 %v1831, %v1848
        %v1850 = vadd.f32 %v1849, 0.4994258
        %v1851 = vmul.f32 %v1831, %v1850
        %v1852 = vadd.f32 %v1851, 1.0
        %v1853 = vrcp.pop %v1852
        %v1854 = vmul.f32 %v1852, %v1853
        %v1855 = vsub.f32 1.0, %v1854
        %v1856 = vmul.f32 %v1853, %v1855
        %v1857 = vadd.f32 %v1853, %v1856
        %vm1858 = vweird.f32 %v1852
        %vm1859 = vweird.f32 %v1853
        %vm1860 = vmor %vm1858, %vm1859
        %v1861 = vsel %vm1860, %v1853, %v1857
        %v1862 = vand.u32 2147483647, %v1852
        %vm1863 = vcmp.eq.f32.partialorder %v1862, 8.507059e+37
        %v1864 = vand.u32 %v1852, 2147483648
        %v1865 = vor.u32 1.1754944e-38, %v1864
        %v1866 = vsel %vm1863, %v1865, %v1861
        %v1867 = vmul.f32 %v1842, %v1866
        %v1868 = vmin.f32 %v1867, 1.0
        %v1869 = vmax.f32 %v1868, -1.0
        %v1870 = vmul.f32 %v629, %v629
        %v1871 = vmin.f32 16.0, %v1870
        %v1872 = vmul.f32 %v1871, 2.1237322e-06
        %v1873 = vadd.f32 %v1872, 0.00028619796
        %v1874 = vmul.f32 %v1871, %v1873
        %v1875 = vadd.f32 %v1874, 0.0036580483
        %v1876 = vmul.f32 %v1871, %v1875
        %v1877 = vadd.f32 %v1876, 0.05243302
        %v1878 = vmul.f32 %v1871, %v1877
        %v1879 = vadd.f32 %v1878, 0.18741608
        %v1880 = vmul.f32 %v1871, %v1879
        %v1881 = vadd.f32 %v1880, 1.1283791
        %v1882 = vmul.f32 %v629, %v1881
        %v1883 = vmul.f32 %v1871, 3.8918573e-05
        %v1884 = vadd.f32 %v1883, 0.001143296
        %v1885 = vmul.f32 %v1871, %v1884
        %v1886 = vadd.f32 %v1885, 0.014752088
        %v1887 = vmul.f32 %v1871, %v1886
        %v1888 = vadd.f32 %v1887, 0.112945676
        %v1889 = vmul.f32 %v1871, %v1888
        %v1890 = vadd.f32 %v1889, 0.4994258
        %v1891 = vmul.f32 %v1871, %v1890
        %v1892 = vadd.f32 %v1891, 1.0
        %v1893 = vrcp.pop %v1892
        %v1894 = vmul.f32 %v1892, %v1893
        %v1895 = vsub.f32 1.0, %v1894
        %v1896 = vmul.f32 %v1893, %v1895
        %v1897 = vadd.f32 %v1893, %v1896
        %vm1898 = vweird.f32 %v1892
        %vm1899 = vweird.f32 %v1893
        %vm1900 = vmor %vm1898, %vm1899
        %v1901 = vsel %vm1900, %v1893, %v1897
        %v1902 = vand.u32 2147483647, %v1892
        %vm1903 = vcmp.eq.f32.partialorder %v1902, 8.507059e+37
        %v1904 = vand.u32 %v1892, 2147483648
        %v1905 = vor.u32 1.1754944e-38, %v1904
        %v1906 = vsel %vm1903, %v1905, %v1901
        %v1907 = vmul.f32 %v1882, %v1906
        %v1908 = vmin.f32 %v1907, 1.0
        %v1909 = vmax.f32 %v1908, -1.0
        %v1910 = vadd.f32 %v669, 1.0
        %v1911 = vadd.f32 %v709, 1.0
        %v1912 = vadd.f32 %v749, 1.0
        %v1913 = vadd.f32 %v789, 1.0
        %v1914 = vadd.f32 %v829, 1.0
        %v1915 = vadd.f32 %v869, 1.0
        %v1916 = vadd.f32 %v909, 1.0
        %v1917 = vadd.f32 %v949, 1.0
        %v1918 = vadd.f32 %v989, 1.0
        %v1919 = vadd.f32 %v1029, 1.0
        %v1920 = vadd.f32 %v1069, 1.0
        %v1921 = vadd.f32 %v1109, 1.0
        %v1922 = vadd.f32 %v1149, 1.0
        %v1923 = vadd.f32 %v1189, 1.0
        %v1924 = vadd.f32 %v1229, 1.0
        %v1925 = vadd.f32 %v1269, 1.0
        %v1926 = vadd.f32 %v1309, 1.0
        %v1927 = vadd.f32 %v1349, 1.0
        %v1928 = vadd.f32 %v1389, 1.0
        %v1929 = vadd.f32 %v1429, 1.0
        %v1930 = vadd.f32 %v1469, 1.0
        %v1931 = vadd.f32 %v1509, 1.0
        %v1932 = vadd.f32 %v1549, 1.0
        %v1933 = vadd.f32 %v1589, 1.0
        %v1934 = vadd.f32 %v1629, 1.0
        %v1935 = vadd.f32 %v1669, 1.0
        %v1936 = vadd.f32 %v1709, 1.0
        %v1937 = vadd.f32 %v1749, 1.0
        %v1938 = vadd.f32 %v1789, 1.0
        %v1939 = vadd.f32 %v1829, 1.0
        %v1940 = vadd.f32 %v1869, 1.0
        %v1941 = vadd.f32 %v1909, 1.0
        %v1942 = vmul.f32 %v566, %v1910
        %v1943 = vmul.f32 %v567, %v1911
        %v1944 = vmul.f32 %v568, %v1912
        %v1945 = vmul.f32 %v569, %v1913
        %v1946 = vmul.f32 %v570, %v1914
        %v1947 = vmul.f32 %v571, %v1915
        %v1948 = vmul.f32 %v572, %v1916
        %v1949 = vmul.f32 %v573, %v1917
        %v1950 = vmul.f32 %v574, %v1918
        %v1951 = vmul.f32 %v575, %v1919
        %v1952 = vmul.f32 %v576, %v1920
        %v1953 = vmul.f32 %v577, %v1921
        %v1954 = vmul.f32 %v578, %v1922
        %v1955 = vmul.f32 %v579, %v1923
        %v1956 = vmul.f32 %v580, %v1924
        %v1957 = vmul.f32 %v581, %v1925
        %v1958 = vmul.f32 %v582, %v1926
        %v1959 = vmul.f32 %v583, %v1927
        %v1960 = vmul.f32 %v584, %v1928
        %v1961 = vmul.f32 %v585, %v1929
        %v1962 = vmul.f32 %v586, %v1930
        %v1963 = vmul.f32 %v587, %v1931
        %v1964 = vmul.f32 %v588, %v1932
        %v1965 = vmul.f32 %v589, %v1933
        %v1966 = vmul.f32 %v590, %v1934
        %v1967 = vmul.f32 %v591, %v1935
        %v1968 = vmul.f32 %v592, %v1936
        %v1969 = vmul.f32 %v593, %v1937
        %v1970 = vmul.f32 %v594, %v1938
        %v1971 = vmul.f32 %v595, %v1939
        %v1972 = vmul.f32 %v596, %v1940
        %v1973 = vmul.f32 %v597, %v1941
        %1974 = vmatpush.msra.mxu0 %v1972
        %1975 = vmatpush.msra.mxu0 %v1970
        %1976 = vmatpush.msra.mxu0 %v1968
        %1977 = vmatpush.msra.mxu0 %v1966
        %1978 = vmatpush.msra.mxu0 %v1964
        %1979 = vmatpush.msra.mxu0 %v1962
        %1980 = vmatpush.msra.mxu0 %v1960
        %1981 = vmatpush.msra.mxu0 %v1958
        %1982 = vmatpush.msra.mxu0 %v1956
        %1983 = vmatpush.msra.mxu0 %v1954
        %1984 = vmatpush.msra.mxu0 %v1952
        %1985 = vmatpush.msra.mxu0 %v1950
        %1986 = vmatpush.msra.mxu0 %v1948
        %1987 = vmatpush.msra.mxu0 %v1946
        %1988 = vmatpush.msra.mxu0 %v1944
        %1989 = vmatpush.msra.mxu0 %v1942
        %1990 = vmatmul.f32.gmra.mxu0 %v291
        %v1991 = vpop.f32.mrf.mxu0
        %v1992 = vadd.f32 %v335, %v1991
        %1993 = vmatmul.f32.gmra.mxu0 %v292
        %v1994 = vpop.f32.mrf.mxu0
        %v1995 = vadd.f32 %v337, %v1994
        %1996 = vmatmul.f32.gmra.mxu0 %v293
        %v1997 = vpop.f32.mrf.mxu0
        %v1998 = vadd.f32 %v339, %v1997
        %1999 = vmatmul.f32.gmra.mxu0 %v294
        %v2000 = vpop.f32.mrf.mxu0
        %v2001 = vadd.f32 %v341, %v2000
        %2002 = vdwg.mxu0
        %2003 = vmatpush.msra.mxu0 %v1973
        %2004 = vmatpush.msra.mxu0 %v1971
        %2005 = vmatpush.msra.mxu0 %v1969
        %2006 = vmatpush.msra.mxu0 %v1967
        %2007 = vmatpush.msra.mxu0 %v1965
        %2008 = vmatpush.msra.mxu0 %v1963
        %2009 = vmatpush.msra.mxu0 %v1961
        %2010 = vmatpush.msra.mxu0 %v1959
        %2011 = vmatpush.msra.mxu0 %v1957
        %2012 = vmatpush.msra.mxu0 %v1955
        %2013 = vmatpush.msra.mxu0 %v1953
        %2014 = vmatpush.msra.mxu0 %v1951
        %2015 = vmatpush.msra.mxu0 %v1949
        %2016 = vmatpush.msra.mxu0 %v1947
        %2017 = vmatpush.msra.mxu0 %v1945
        %2018 = vmatpush.msra.mxu0 %v1943
        %2019 = vmatmul.f32.gmra.mxu0 %v291
        %v2020 = vpop.f32.mrf.mxu0
        %v2021 = vadd.f32 %v336, %v2020
        %2022 = vmatmul.f32.gmra.mxu0 %v292
        %v2023 = vpop.f32.mrf.mxu0
        %v2024 = vadd.f32 %v338, %v2023
        %2025 = vmatmul.f32.gmra.mxu0 %v293
        %v2026 = vpop.f32.mrf.mxu0
        %v2027 = vadd.f32 %v340, %v2026
        %2028 = vmatmul.f32.gmra.mxu0 %v294
        %v2029 = vpop.f32.mrf.mxu0
        %v2030 = vadd.f32 %v342, %v2029
        %2031 = vdwg.mxu0
        %v2032 = vmax.f32 %v430, %v436
        %v2033 = vmax.f32 %v433, %v439
        %v2034 = vmax.f32 %v2032, %v2033
        %v2035 = vrot.slane %v2034, 4
        %v2036 = vmax.f32 %v2034, %v2035
        %v2037 = vrot.slane %v2036, 2
        %v2038 = vmax.f32 %v2036, %v2037
        %v2039 = vrot.slane %v2038, 1
        %v2040 = vmax.f32 %v2038, %v2039
        %v2041 = vmax.f32 %v507, %v513
        %v2042 = vmax.f32 %v510, %v516
        %v2043 = vmax.f32 %v2041, %v2042
        %v2044 = vrot.slane %v2043, 4
        %v2045 = vmax.f32 %v2043, %v2044
        %v2046 = vrot.slane %v2045, 2
        %v2047 = vmax.f32 %v2045, %v2046
        %v2048 = vrot.slane %v2047, 1
        %v2049 = vmax.f32 %v2047, %v2048
        %v2050 = vsub.f32 %v430, %v2040
        %v2051 = vsub.f32 %v507, %v2049
        %v2052 = vsub.f32 %v433, %v2040
        %v2053 = vsub.f32 %v510, %v2049
        %v2054 = vsub.f32 %v436, %v2040
        %v2055 = vsub.f32 %v513, %v2049
        %v2056 = vsub.f32 %v439, %v2040
        %v2057 = vsub.f32 %v516, %v2049
        %v2058 = vmul.f32 %v2050, 1.442695
        %v2059 = vpow.pop %v2058
        %v2060 = vmul.f32 %v2051, 1.442695
        %v2061 = vpow.pop %v2060
        %v2062 = vmul.f32 %v2052, 1.442695
        %v2063 = vpow.pop %v2062
        %v2064 = vmul.f32 %v2053, 1.442695
        %v2065 = vpow.pop %v2064
        %v2066 = vmul.f32 %v2054, 1.442695
        %v2067 = vpow.pop %v2066
        %v2068 = vmul.f32 %v2055, 1.442695
        %v2069 = vpow.pop %v2068
        %v2070 = vmul.f32 %v2056, 1.442695
        %v2071 = vpow.pop %v2070
        %v2072 = vmul.f32 %v2057, 1.442695
        %v2073 = vpow.pop %v2072
        %v2074 = vadd.f32 %v2059, %v2063
        %v2075 = vadd.f32 %v2074, %v2067
        %v2076 = vadd.f32 %v2075, %v2071
        %v2077 = vrot.slane %v2076, 4
        %v2078 = vadd.f32 %v2076, %v2077
        %v2079 = vrot.slane %v2078, 2
        %v2080 = vadd.f32 %v2078, %v2079
        %v2081 = vrot.slane %v2080, 1
        %v2082 = vadd.f32 %v2080, %v2081
        %v2083 = vadd.f32 %v2061, %v2065
        %v2084 = vadd.f32 %v2083, %v2069
        %v2085 = vadd.f32 %v2084, %v2073
        %v2086 = vrot.slane %v2085, 4
        %v2087 = vadd.f32 %v2085, %v2086
        %v2088 = vrot.slane %v2087, 2
        %v2089 = vadd.f32 %v2087, %v2088
        %v2090 = vrot.slane %v2089, 1
        %v2091 = vadd.f32 %v2089, %v2090
        %v2092 = vrcp.pop %v2082
        %v2093 = vrcp.pop %v2091
        %v2094 = vmul.f32 %v2082, %v2092
        %v2095 = vmul.f32 %v2091, %v2093
        %v2096 = vsub.f32 2.0, %v2094
        %v2097 = vsub.f32 2.0, %v2095
        %v2098 = vmul.f32 %v2092, %v2096
        %v2099 = vmul.f32 %v2093, %v2097
        %v2100 = vmul.f32 %v2059, %v2098
        %v2101 = vmul.f32 %v2061, %v2099
        %v2102 = vmul.f32 %v2063, %v2098
        %v2103 = vmul.f32 %v2065, %v2099
        %v2104 = vmul.f32 %v2067, %v2098
        %v2105 = vmul.f32 %v2069, %v2099
        %v2106 = vmul.f32 %v2071, %v2098
        %v2107 = vmul.f32 %v2073, %v2099
        %v2108 = vmul.f32 %v2100, %v1992
        %v2109 = vmul.f32 %v2101, %v2021
        %v2110 = vmul.f32 %v2102, %v1995
        %v2111 = vmul.f32 %v2103, %v2024
        %v2112 = vmul.f32 %v2104, %v1998
        %v2113 = vmul.f32 %v2105, %v2027
        %v2114 = vmul.f32 %v2106, %v2001
        %v2115 = vmul.f32 %v2107, %v2030
        %2116 = vst [vmem:[%s259] sm:$0xff] %v2108
        %2117 = vst [vmem:[%s259 + $0x8] sm:$0xff] %v2109
        %2118 = vst [vmem:[%s259 + $0x10] sm:$0xff] %v2110
        %2119 = vst [vmem:[%s259 + $0x18] sm:$0xff] %v2111
        %2120 = vst [vmem:[%s259 + $0x20] sm:$0xff] %v2112
        %2121 = vst [vmem:[%s259 + $0x28] sm:$0xff] %v2113
        %2122 = vst [vmem:[%s259 + $0x30] sm:$0xff] %v2114
        %2123 = vst [vmem:[%s259 + $0x38] sm:$0xff] %v2115
        %s2124 = sand.u32 %s154, 1
        %s2125 = scalar_lea.sflag [#allocation4], %s2124
        %s2126 = sand.u32 %s154, 1
        %s2127 = smul.addr %s2126, 64
        %s2128 = scalar_lea.vmem [#allocation5], %s2127
        // Predicated region
        $region45: #{tpu_custom_call.1} parent=39 // pred_check
          %p2129 = pneg %p164
        $region46: #{tpu_custom_call.1} parent=39 // pred_check_branch
          %2131 = sbr.rel (%p2129) target = $region48
        $region47: #{tpu_custom_call.1} parent=39 // pred_region
          %s2132 = smul.u32 2, %s25
          %2134 = vsyncadd %s2125, 0
          %s2135 = smul.addr %s24, 8
          %s2136 = sadd.s32 %s2132, %s2135
          %s2137 = smul.addr %s2136, 8
          %s2138 = scalar_lea.hbm %s5, %s2137
          %s2139 = sshll.u32 %s2128, 4
          %s2140 = int_to_ptr.vmem [resolvable:$true] %s2139
          %s2141 = sshll.u32 %s2138, 4
          %s2142 = int_to_ptr.hbm [resolvable:$true] %s2141
          %2147 = dma.vmem_to_hbm [thread:$0]  %s2140, 1024, %s2142, %s2125, 256, 256, 16
        $region48: #{tpu_custom_call.1} parent=39 // pred_fallthru
          _
      $region40: #{tpu_custom_call.1} parent=5 // pred_fallthru
        _
      %p2148 = scmp.le.s32.totalorder 2, %s15
      // Predicated region
      $region49: #{tpu_custom_call.1} parent=5 // pred_check
        %p2149 = pneg %p2148
      $region50: #{tpu_custom_call.1} parent=5 // pred_check_branch
        %2151 = sbr.rel (%p2149) target = $region52
      $region51: #{tpu_custom_call.1} parent=5 // pred_region
        %s2152 = ssub.s32 %s15, 2
        // Predicated region
        $region53: #{tpu_custom_call.1} parent=51 // pred_check
          %p2153 = pneg %p170
        $region54: #{tpu_custom_call.1} parent=51 // pred_check_branch
          %2155 = sbr.rel (%p2153) target = $region56
        $region55: #{tpu_custom_call.1} parent=51 // pred_region
          %s2156 = sand.u32 %s155, 1
          %s2157 = scalar_lea.sflag [#allocation4], %s2156
          %s2158 = sand.u32 %s155, 1
          %s2159 = smul.addr %s2158, 64
          %s2160 = scalar_lea.vmem [#allocation5], %s2159
          %2162 = dma.done %s2157, 1024
        $region56: #{tpu_custom_call.1} parent=51 // pred_fallthru
          _
      $region52: #{tpu_custom_call.1} parent=5 // pred_fallthru
        _
    $region6: #{tpu_custom_call.1} parent=1 // loop_footer
      %s19 = sadd.s32 1, %s15
    $region7: #{tpu_custom_call.1} parent=1 // loop_footer_branch
      %14 = sbr.rel target = $region3
    $region8: #{tpu_custom_call.1} parent=1 // loop_exit
      _
    %2163 = vsyncpa [#allocation3], 1
    %s2164 = scalar_lea.sflag [#allocation3], 1
    %2165 = vsyncpa %s2164, 1
    %2166 = vsyncpa [#allocation4], 1
    %s2167 = scalar_lea.sflag [#allocation4], 1
    %2168 = vsyncpa %s2167, 1

</llo_original>
